<compile_context>
chip_gen: v6e
topology: v6e:2x2x1
jax: 0.10.0
libtpu: 0.0.40
codegen_flags: <defaults>
</compile_context>

<pallas_src>
import jax
import jax.numpy as jnp
from jax import random
from jax.experimental import pallas as pl
from jax.experimental.pallas import tpu as pltpu

EPS = 1e-5                    # BatchNorm1d eps; BN applied in eval mode (folded scale/shift)
ACT_DTYPE = jnp.bfloat16      # activation storage between blocks + MXU operand dtype


# ---------------------------------------------------------------------------
# In-kernel helpers (operate on (Bc, L, C) values)
# ---------------------------------------------------------------------------
def _scse(x, w1, b1, w2, b2, ws, bs):
    """Spatial+Channel squeeze-excitation, fully on VPU/XLU/EUP (no MXU).

    x : (Bc, L, C)   bf16 (att1) or f32 (att2)
    w1: (Cr, C)  cSE 1x1-conv #1 weight (torch (out,in) layout, k dim squeezed)
    b1: (Cr, 1)
    w2: (Cr, C)  cSE 1x1-conv #2 weight stored transposed: w2[r, c] = torch_w2[c, r]
    b2: (1, C)
    ws: (1, C)   sSE 1x1-conv weight
    bs: scalar   sSE bias (read from SMEM)
    Returns x * (cSE + sSE) in x.dtype (one full-size multiply, one small cast).
    """
    f32 = jnp.float32
    xm = jnp.mean(x, axis=1, keepdims=True).astype(f32)                          # (Bc,1,C)
    h = jnp.maximum(jnp.sum(w1[None] * xm, axis=-1, keepdims=True) + b1, 0.0)    # (Bc,Cr,1) lane-reduce
    cse = jax.nn.sigmoid(jnp.sum(w2[None] * h, axis=1, keepdims=True) + b2)      # (Bc,1,C) sublane-reduce
    s = jnp.sum(x * ws.astype(x.dtype), axis=-1, keepdims=True)                  # (Bc,L,1) lane-reduce
    sse = jax.nn.sigmoid(s.astype(f32) + bs)                                     # (Bc,L,1)
    return x * (cse + sse).astype(x.dtype)                                       # fused gate multiply


def _conv3_bn_relu(x, w_flat, shift):
    """k=3 / pad=1 / stride=1 Conv1d (no bias) + folded eval-BatchNorm + ReLU.

    x:      (Bc, L, C) bf16
    w_flat: (3*C, Cout) bf16, rows ordered [tap l-1 ; tap l ; tap l+1],
            BN scale already folded in (done in f32 in the wrapper).
    shift:  (1, Cout) f32 (beta - mean * gamma/sqrt(var+eps))
    Returns (Bc, L, Cout) f32.
    The zero-pad halo is built in-kernel with static slices + a zero row; the
    three taps are lane-concatenated so the conv is a single K=3C MXU matmul
    with M = Bc*L.
    """
    Bc, L, C = x.shape
    Cout = w_flat.shape[1]
    zero_row = jnp.zeros((Bc, 1, C), x.dtype)
    x_prev = jnp.concatenate([zero_row, x[:, :L - 1, :]], axis=1)   # x[l-1], 0 at l=0
    x_next = jnp.concatenate([x[:, 1:, :], zero_row], axis=1)       # x[l+1], 0 at l=L-1
    taps = jnp.concatenate([x_prev, x, x_next], axis=-1)            # (Bc, L, 3C)
    acc = jnp.dot(taps.reshape(Bc * L, 3 * C), w_flat,
                  preferred_element_type=jnp.float32)               # (Bc*L, Cout) f32
    y = jnp.maximum(acc + shift, 0.0)
    return y.reshape(Bc, L, Cout)


# ---------------------------------------------------------------------------
# Fused decoder-block kernel: (att1?) -> conv1 -> conv2 -> att2, one batch chunk
# ---------------------------------------------------------------------------
def _make_block_kernel(has_att1):
    def kernel(*refs):
        if has_att1:
            (x_ref,
             a1w1, a1b1, a1w2, a1b2, a1ws, a1bs,
             c1w, c1sh,
             c2w, c2sh,
             a2w1, a2b1, a2w2, a2b2, a2ws, a2bs,
             o_ref) = refs
        else:
            (x_ref,
             c1w, c1sh,
             c2w, c2sh,
             a2w1, a2b1, a2w2, a2b2, a2ws, a2bs,
             o_ref) = refs

        x = x_ref[...]                                           # (Bc, L, Cin[+Cskip]) bf16
        if has_att1:
            x = _scse(x, a1w1[...], a1b1[...], a1w2[...], a1b2[...],
                      a1ws[...], a1bs[0, 0])                     # bf16
        x = _conv3_bn_relu(x, c1w[...], c1sh[...]).astype(ACT_DTYPE)   # bf16 into conv2
        x = _conv3_bn_relu(x, c2w[...], c2sh[...])                     # f32 into att2
        x = _scse(x, a2w1[...], a2b1[...], a2w2[...], a2b2[...],
                  a2ws[...], a2bs[0, 0])
        o_ref[...] = x.astype(o_ref.dtype)

    return kernel


def _fold_bn_into_conv(c):
    """Eval-mode BatchNorm folded into the conv weight (scale) + a shift.

    Fold is done in f32 *before* the bf16 cast to avoid compounding quantization.
    Returns (w_flat (3*Cin, Cout) bf16, shift (1, Cout) f32).
    """
    inv = c["gamma"] / jnp.sqrt(c["var"] + EPS)                      # (Cout,)
    w = c["w"] * inv[None, None, :]                                  # (3, Cin, Cout) f32
    k3, cin, cout = w.shape
    w_flat = w.reshape(k3 * cin, cout).astype(ACT_DTYPE)             # rows: [tap0 ; tap1 ; tap2]
    shift = (c["beta"] - c["mean"] * inv).reshape(1, -1).astype(jnp.float32)
    return w_flat, shift


def _pick_batch_chunk(b, length, max_rows=1024):
    """Largest divisor of b such that bc*L stays a reasonable sublane/M extent."""
    bc = 1
    for d in range(1, b + 1):
        if b % d == 0 and d * length <= max(max_rows, length):
            bc = d
    return bc


def fused_decoder_block(p, x, has_att1):
    """x: (B, L, C) bf16 (already upsampled, skip already concatenated)."""
    B, L, C = x.shape
    c1w, c1sh = _fold_bn_into_conv(p["conv1"])
    c2w, c2sh = _fold_bn_into_conv(p["conv2"])
    Cout = c1w.shape[1]

    bc = _pick_batch_chunk(B, L)      # fold batch into sublanes / MXU M dim
    grid = (B // bc,)

    def full(arr):
        nd = arr.ndim
        return pl.BlockSpec(arr.shape, lambda b, _nd=nd: (0,) * _nd)

    def smem():
        return pl.BlockSpec(memory_space=pltpu.MemorySpace.SMEM)

    operands = [x]
    in_specs = [pl.BlockSpec((bc, L, C), lambda b: (b, 0, 0))]

    def add_scse(a):
        for nm in ("w1", "b1", "w2", "b2", "ws"):
            operands.append(a[nm])
            in_specs.append(full(a[nm]))
        operands.append(a["bs"])
        in_specs.append(smem())                 # scalar bias via SMEM (no VMEM tile DMA)

    if has_att1:
        add_scse(p["att1"])
    for wv, sh in ((c1w, c1sh), (c2w, c2sh)):
        operands.append(wv)
        in_specs.append(full(wv))               # constant index map -> stays VMEM-resident
        operands.append(sh)
        in_specs.append(full(sh))
    add_scse(p["att2"])

    return pl.pallas_call(
        _make_block_kernel(has_att1),
        out_shape=jax.ShapeDtypeStruct((B, L, Cout), ACT_DTYPE),
        grid=grid,
        in_specs=in_specs,
        out_specs=pl.BlockSpec((bc, L, Cout), lambda b: (b, 0, 0)),
        compiler_params=pltpu.CompilerParams(dimension_semantics=("parallel",)),
    )(*operands)


# ---------------------------------------------------------------------------
# Deterministic parameter init (shapes follow the PyTorch module's __init__)
# ---------------------------------------------------------------------------
def init_scse_params(key, C, reduction=16):
    Cr = C // reduction
    assert Cr >= 1, "in_channels must be >= reduction"
    k = random.split(key, 6)
    return dict(
        w1=0.2 * random.normal(k[0], (Cr, C), jnp.float32),   # cSE conv1 (out,in)
        b1=0.1 * random.normal(k[1], (Cr, 1), jnp.float32),
        w2=0.2 * random.normal(k[2], (Cr, C), jnp.float32),   # cSE conv2, stored (in,out)
        b2=0.1 * random.normal(k[3], (1, C), jnp.float32),
        ws=0.2 * random.normal(k[4], (1, C), jnp.float32),    # sSE conv weight
        bs=0.1 * random.normal(k[5], (1, 1), jnp.float32),    # sSE bias (SMEM scalar)
    )


def init_conv_bn_params(key, Cin, Cout):
    k = random.split(key, 3)
    return dict(
        w=0.1 * random.normal(k[0], (3, Cin, Cout), jnp.float32),  # w[k,i,o] == torch_w[o,i,k]
        gamma=1.0 + 0.1 * random.normal(k[1], (Cout,), jnp.float32),
        beta=0.1 * random.normal(k[2], (Cout,), jnp.float32),
        mean=jnp.zeros((Cout,), jnp.float32),   # eval-mode BN, fresh running stats
        var=jnp.ones((Cout,), jnp.float32),
    )


def init_decoder_block(key, in_c, skip_c, out_c):
    k = random.split(key, 4)
    p = dict(
        conv1=init_conv_bn_params(k[1], in_c + skip_c, out_c),
        conv2=init_conv_bn_params(k[2], out_c, out_c),
        att2=init_scse_params(k[3], out_c),
    )
    if skip_c > 0:
        p["att1"] = init_scse_params(k[0], in_c + skip_c)
    return p


def init_decoder(key, nblocks, channels):
    channels = channels[-nblocks:]
    in_channels = (channels[0], *channels[:-1])
    skip_channels = (*channels[1:], 0)
    out_channels = channels
    keys = random.split(key, nblocks)
    return [init_decoder_block(k, i, s, o)
            for k, i, s, o in zip(keys, in_channels, skip_channels, out_channels)]


# ---------------------------------------------------------------------------
# Forward pass (glue in plain JAX; each block is a single fused Pallas kernel)
# ---------------------------------------------------------------------------
def nearest_upsample(x, target_len):
    # x: (B, L, C) -> (B, target_len, C); matches F.interpolate(mode='nearest')
    L = x.shape[1]
    idx = (jnp.arange(target_len) * L) // target_len
    return x[:, idx, :]


def decoder_block_forward(p, x, skip, target_len):
    x = nearest_upsample(x, target_len)
    if skip is not None:
        x = jnp.concatenate([x, skip.astype(x.dtype)], axis=-1)
        return fused_decoder_block(p, x, has_att1=True)
    return fused_decoder_block(p, x, has_att1=False)


def decoder_forward(blocks, *feats_ncl):
    # feats follow the PyTorch call convention: NCL tensors, ordered shallow -> deep.
    feats = [jnp.transpose(f, (0, 2, 1)).astype(ACT_DTYPE) for f in feats_ncl]  # NCL -> NLC
    feats = feats[::-1]
    x = feats[0]
    skips = feats[1:]
    for i, p in enumerate(blocks):
        skip = skips[i] if i < len(skips) - 1 else None
        target_len = skips[i].shape[1]       # "shape" arg in the PyTorch code
        x = decoder_block_forward(p, x, skip, target_len)
    return jnp.transpose(x, (0, 2, 1)).astype(jnp.float32)   # back to NCL like PyTorch output


if __name__ == "__main__":
    key = random.PRNGKey(0)
    kp, k1, k2, k3 = random.split(key, 4)

    nblocks = 2
    channels = [32, 16]          # channels[0] = deepest feature channel count
    params = init_decoder(kp, nblocks, channels)

    B = 2
    # Encoder features in PyTorch NCL layout, ordered shallow -> deep:
    f_shallow = random.normal(k1, (B, 8, 32), jnp.float32)   # only its shape drives the last upsample
    f_mid     = random.normal(k2, (B, 16, 16), jnp.float32)  # skip for block 0
    f_deep    = random.normal(k3, (B, 32, 8), jnp.float32)   # deepest feature (decoder input)

    fwd = jax.jit(lambda *f: decoder_forward(params, *f))
    out = fwd(f_shallow, f_mid, f_deep)
    jax.block_until_ready(out)
    assert out.shape == (B, 16, 32), out.shape
    assert bool(jnp.all(jnp.isfinite(out)))
    print("KERNEL_OK")
</pallas_src>

<mosaic_0001>
module attributes {stable_mosaic.version = 11 : i64} {
  func.func @kernel(%arg0: i32, %arg1: memref<2x32x32xbf16, #tpu.memory_space<vmem>>, %arg2: memref<96x16xbf16, #tpu.memory_space<vmem>>, %arg3: memref<1x16xf32, #tpu.memory_space<vmem>>, %arg4: memref<48x16xbf16, #tpu.memory_space<vmem>>, %arg5: memref<1x16xf32, #tpu.memory_space<vmem>>, %arg6: memref<1x16xf32, #tpu.memory_space<vmem>>, %arg7: memref<1x1xf32, #tpu.memory_space<vmem>>, %arg8: memref<1x16xf32, #tpu.memory_space<vmem>>, %arg9: memref<1x16xf32, #tpu.memory_space<vmem>>, %arg10: memref<1x16xf32, #tpu.memory_space<vmem>>, %arg11: memref<1x1xf32, #tpu.memory_space<smem>>, %arg12: memref<2x32x16xbf16, #tpu.memory_space<vmem>>) attributes {dimension_semantics = [#tpu.dimension_semantics<parallel>], iteration_bounds = array<i64: 1>, scalar_prefetch = 0 : i64, scratch_operands = 0 : i64, tpu.core_type = #tpu.core_type<tc>, window_params = [{transform_indices = @transform_0, window_bounds = array<i64: 2, 32, 32>}, {pipeline_mode = #tpu.pipeline_mode<synchronous>, transform_indices = @transform_1, window_bounds = array<i64: 96, 16>}, {pipeline_mode = #tpu.pipeline_mode<synchronous>, transform_indices = @transform_2, window_bounds = array<i64: 1, 16>}, {pipeline_mode = #tpu.pipeline_mode<synchronous>, transform_indices = @transform_3, window_bounds = array<i64: 48, 16>}, {pipeline_mode = #tpu.pipeline_mode<synchronous>, transform_indices = @transform_4, window_bounds = array<i64: 1, 16>}, {pipeline_mode = #tpu.pipeline_mode<synchronous>, transform_indices = @transform_5, window_bounds = array<i64: 1, 16>}, {pipeline_mode = #tpu.pipeline_mode<synchronous>, transform_indices = @transform_6, window_bounds = array<i64: 1, 1>}, {pipeline_mode = #tpu.pipeline_mode<synchronous>, transform_indices = @transform_7, window_bounds = array<i64: 1, 16>}, {pipeline_mode = #tpu.pipeline_mode<synchronous>, transform_indices = @transform_8, window_bounds = array<i64: 1, 16>}, {pipeline_mode = #tpu.pipeline_mode<synchronous>, transform_indices = @transform_9, window_bounds = array<i64: 1, 16>}, {transform_indices = @transform_10, window_bounds = array<i64: 1, 1>}, {transform_indices = @transform_11, window_bounds = array<i64: 2, 32, 16>}]} {
    %c0 = arith.constant 0 : index
    %c0_0 = arith.constant 0 : index
    %c0_1 = arith.constant 0 : index
    %0 = vector.load %arg1[%c0, %c0_0, %c0_1] : memref<2x32x32xbf16, #tpu.memory_space<vmem>>, vector<2x32x32xbf16>
    %c0_2 = arith.constant 0 : index
    %c0_3 = arith.constant 0 : index
    %1 = vector.load %arg2[%c0_2, %c0_3] : memref<96x16xbf16, #tpu.memory_space<vmem>>, vector<96x16xbf16>
    %c0_4 = arith.constant 0 : index
    %c0_5 = arith.constant 0 : index
    %2 = vector.load %arg3[%c0_4, %c0_5] : memref<1x16xf32, #tpu.memory_space<vmem>>, vector<1x16xf32>
    %cst = arith.constant 0.000000e+00 : bf16
    %3 = vector.broadcast %cst : bf16 to vector<2x1x32xbf16>
    %4 = vector.extract_strided_slice %0 {offsets = [0, 0, 0], sizes = [2, 31, 32], strides = [1, 1, 1]} : vector<2x32x32xbf16> to vector<2x31x32xbf16>
    %5 = tpu.concatenate %3, %4 in 1 : vector<2x1x32xbf16>, vector<2x31x32xbf16> -> vector<2x32x32xbf16>
    %6 = vector.extract_strided_slice %0 {offsets = [0, 1, 0], sizes = [2, 31, 32], strides = [1, 1, 1]} : vector<2x32x32xbf16> to vector<2x31x32xbf16>
    %7 = tpu.concatenate %6, %3 in 1 : vector<2x31x32xbf16>, vector<2x1x32xbf16> -> vector<2x32x32xbf16>
    %8 = tpu.concatenate %5, %0, %7 in 2 : vector<2x32x32xbf16>, vector<2x32x32xbf16>, vector<2x32x32xbf16> -> vector<2x32x96xbf16>
    %9 = vector.shape_cast %8 : vector<2x32x96xbf16> to vector<64x96xbf16>
    %cst_6 = arith.constant dense<0.000000e+00> : vector<64x16xf32>
    %10 = tpu.matmul %9, %1, %cst_6 {dimension_numbers = #tpu.dot_dimension_numbers<[1], [0], [0], [1], [0, 0, 1, 1], [], []>} : vector<64x96xbf16>, vector<96x16xbf16>, vector<64x16xf32> -> vector<64x16xf32>
    %11 = vector.broadcast %2 : vector<1x16xf32> to vector<64x16xf32>
    %12 = arith.addf %10, %11 : vector<64x16xf32>
    %cst_7 = arith.constant 0.000000e+00 : f32
    %13 = vector.broadcast %cst_7 : f32 to vector<64x16xf32>
    %14 = arith.maximumf %12, %13 : vector<64x16xf32>
    %15 = vector.shape_cast %14 : vector<64x16xf32> to vector<2x32x16xf32>
    %16 = arith.truncf %15 : vector<2x32x16xf32> to vector<2x32x16xbf16>
    %c0_8 = arith.constant 0 : index
    %c0_9 = arith.constant 0 : index
    %17 = vector.load %arg4[%c0_8, %c0_9] : memref<48x16xbf16, #tpu.memory_space<vmem>>, vector<48x16xbf16>
    %c0_10 = arith.constant 0 : index
    %c0_11 = arith.constant 0 : index
    %18 = vector.load %arg5[%c0_10, %c0_11] : memref<1x16xf32, #tpu.memory_space<vmem>>, vector<1x16xf32>
    %cst_12 = arith.constant 0.000000e+00 : bf16
    %19 = vector.broadcast %cst_12 : bf16 to vector<2x1x16xbf16>
    %20 = vector.extract_strided_slice %16 {offsets = [0, 0, 0], sizes = [2, 31, 16], strides = [1, 1, 1]} : vector<2x32x16xbf16> to vector<2x31x16xbf16>
    %21 = tpu.concatenate %19, %20 in 1 : vector<2x1x16xbf16>, vector<2x31x16xbf16> -> vector<2x32x16xbf16>
    %22 = vector.extract_strided_slice %16 {offsets = [0, 1, 0], sizes = [2, 31, 16], strides = [1, 1, 1]} : vector<2x32x16xbf16> to vector<2x31x16xbf16>
    %23 = tpu.concatenate %22, %19 in 1 : vector<2x31x16xbf16>, vector<2x1x16xbf16> -> vector<2x32x16xbf16>
    %24 = tpu.concatenate %21, %16, %23 in 2 : vector<2x32x16xbf16>, vector<2x32x16xbf16>, vector<2x32x16xbf16> -> vector<2x32x48xbf16>
    %25 = vector.shape_cast %24 : vector<2x32x48xbf16> to vector<64x48xbf16>
    %cst_13 = arith.constant dense<0.000000e+00> : vector<64x16xf32>
    %26 = tpu.matmul %25, %17, %cst_13 {dimension_numbers = #tpu.dot_dimension_numbers<[1], [0], [0], [1], [0, 0, 1, 1], [], []>} : vector<64x48xbf16>, vector<48x16xbf16>, vector<64x16xf32> -> vector<64x16xf32>
    %27 = vector.broadcast %18 : vector<1x16xf32> to vector<64x16xf32>
    %28 = arith.addf %26, %27 : vector<64x16xf32>
    %cst_14 = arith.constant 0.000000e+00 : f32
    %29 = vector.broadcast %cst_14 : f32 to vector<64x16xf32>
    %30 = arith.maximumf %28, %29 : vector<64x16xf32>
    %31 = vector.shape_cast %30 : vector<64x16xf32> to vector<2x32x16xf32>
    %c0_15 = arith.constant 0 : index
    %c0_16 = arith.constant 0 : index
    %32 = vector.load %arg6[%c0_15, %c0_16] : memref<1x16xf32, #tpu.memory_space<vmem>>, vector<1x16xf32>
    %c0_17 = arith.constant 0 : index
    %c0_18 = arith.constant 0 : index
    %33 = vector.load %arg7[%c0_17, %c0_18] : memref<1x1xf32, #tpu.memory_space<vmem>>, vector<1x1xf32>
    %c0_19 = arith.constant 0 : index
    %c0_20 = arith.constant 0 : index
    %34 = vector.load %arg8[%c0_19, %c0_20] : memref<1x16xf32, #tpu.memory_space<vmem>>, vector<1x16xf32>
    %c0_21 = arith.constant 0 : index
    %c0_22 = arith.constant 0 : index
    %35 = vector.load %arg9[%c0_21, %c0_22] : memref<1x16xf32, #tpu.memory_space<vmem>>, vector<1x16xf32>
    %c0_23 = arith.constant 0 : index
    %c0_24 = arith.constant 0 : index
    %36 = vector.load %arg10[%c0_23, %c0_24] : memref<1x16xf32, #tpu.memory_space<vmem>>, vector<1x16xf32>
    %c0_25 = arith.constant 0 : index
    %c0_26 = arith.constant 0 : index
    %37 = memref.load %arg11[%c0_25, %c0_26] : memref<1x1xf32, #tpu.memory_space<smem>>
    %cst_27 = arith.constant dense<0.000000e+00> : vector<2x16xf32>
    %38 = vector.multi_reduction <add>, %31, %cst_27 [1] : vector<2x32x16xf32> to vector<2x16xf32>
    %39 = vector.shape_cast %38 : vector<2x16xf32> to vector<2x1x16xf32>
    %cst_28 = arith.constant 3.200000e+01 : f32
    %40 = vector.broadcast %cst_28 : f32 to vector<2x1x16xf32>
    %41 = arith.divf %39, %40 : vector<2x1x16xf32>
    %42 = vector.shape_cast %32 : vector<1x16xf32> to vector<1x1x16xf32>
    %43 = vector.broadcast %42 : vector<1x1x16xf32> to vector<2x1x16xf32>
    %44 = arith.mulf %43, %41 : vector<2x1x16xf32>
    %cst_29 = arith.constant dense<0.000000e+00> : vector<2x1xf32>
    %45 = vector.multi_reduction <add>, %44, %cst_29 [2] : vector<2x1x16xf32> to vector<2x1xf32>
    %46 = vector.shape_cast %45 : vector<2x1xf32> to vector<2x1x1xf32>
    %47 = vector.shape_cast %33 : vector<1x1xf32> to vector<1x1x1xf32>
    %48 = vector.broadcast %47 : vector<1x1x1xf32> to vector<2x1x1xf32>
    %49 = arith.addf %46, %48 : vector<2x1x1xf32>
    %cst_30 = arith.constant 0.000000e+00 : f32
    %50 = vector.broadcast %cst_30 : f32 to vector<2x1x1xf32>
    %51 = arith.maximumf %49, %50 : vector<2x1x1xf32>
    %52 = vector.shape_cast %34 : vector<1x16xf32> to vector<1x1x16xf32>
    %53 = vector.broadcast %52 : vector<1x1x16xf32> to vector<2x1x16xf32>
    %54 = vector.broadcast %51 : vector<2x1x1xf32> to vector<2x1x16xf32>
    %55 = arith.mulf %53, %54 : vector<2x1x16xf32>
    %cst_31 = arith.constant dense<0.000000e+00> : vector<2x16xf32>
    %56 = vector.multi_reduction <add>, %55, %cst_31 [1] : vector<2x1x16xf32> to vector<2x16xf32>
    %57 = vector.shape_cast %56 : vector<2x16xf32> to vector<2x1x16xf32>
    %58 = vector.shape_cast %35 : vector<1x16xf32> to vector<1x1x16xf32>
    %59 = vector.broadcast %58 : vector<1x1x16xf32> to vector<2x1x16xf32>
    %60 = arith.addf %57, %59 : vector<2x1x16xf32>
    %61 = arith.negf %60 : vector<2x1x16xf32>
    %62 = math.exp %61 : vector<2x1x16xf32>
    %cst_32 = arith.constant 1.000000e+00 : f32
    %63 = vector.broadcast %cst_32 : f32 to vector<2x1x16xf32>
    %64 = arith.addf %63, %62 : vector<2x1x16xf32>
    %65 = arith.divf %63, %64 : vector<2x1x16xf32>
    %66 = vector.shape_cast %36 : vector<1x16xf32> to vector<1x1x16xf32>
    %67 = vector.broadcast %66 : vector<1x1x16xf32> to vector<2x32x16xf32>
    %68 = arith.mulf %31, %67 : vector<2x32x16xf32>
    %cst_33 = arith.constant dense<0.000000e+00> : vector<2x32xf32>
    %69 = vector.multi_reduction <add>, %68, %cst_33 [2] : vector<2x32x16xf32> to vector<2x32xf32>
    %70 = vector.shape_cast %69 : vector<2x32xf32> to vector<2x32x1xf32>
    %71 = vector.broadcast %37 : f32 to vector<2x32x1xf32>
    %72 = arith.addf %70, %71 : vector<2x32x1xf32>
    %73 = arith.negf %72 : vector<2x32x1xf32>
    %74 = math.exp %73 : vector<2x32x1xf32>
    %cst_34 = arith.constant 1.000000e+00 : f32
    %75 = vector.broadcast %cst_34 : f32 to vector<2x32x1xf32>
    %76 = arith.addf %75, %74 : vector<2x32x1xf32>
    %77 = arith.divf %75, %76 : vector<2x32x1xf32>
    %78 = vector.broadcast %65 : vector<2x1x16xf32> to vector<2x32x16xf32>
    %79 = vector.broadcast %77 : vector<2x32x1xf32> to vector<2x32x16xf32>
    %80 = arith.addf %78, %79 : vector<2x32x16xf32>
    %81 = arith.mulf %31, %80 : vector<2x32x16xf32>
    %82 = arith.truncf %81 : vector<2x32x16xf32> to vector<2x32x16xbf16>
    %c0_35 = arith.constant 0 : index
    %c0_36 = arith.constant 0 : index
    %c0_37 = arith.constant 0 : index
    %83 = vector.load %arg12[%c0_35, %c0_36, %c0_37] : memref<2x32x16xbf16, #tpu.memory_space<vmem>>, vector<2x32x16xbf16>
    tpu.vector_store %arg12[%c0_35, %c0_36, %c0_37], %82 {strides = array<i32>} : memref<2x32x16xbf16, #tpu.memory_space<vmem>>, vector<2x32x16xbf16>,
    return
  }
  func.func @transform_0(%arg0: i32) -> (i32, i32, i32) {
    %c0_i32 = arith.constant 0 : i32
    %c0_i32_0 = arith.constant 0 : i32
    %c0_i32_1 = arith.constant 0 : i32
    return %arg0, %c0_i32, %c0_i32_0 : i32, i32, i32
  }
  func.func @transform_1(%arg0: i32) -> (i32, i32) {
    %c0_i32 = arith.constant 0 : i32
    %c0_i32_0 = arith.constant 0 : i32
    %c0_i32_1 = arith.constant 0 : i32
    return %c0_i32, %c0_i32_0 : i32, i32
  }
  func.func @transform_2(%arg0: i32) -> (i32, i32) {
    %c0_i32 = arith.constant 0 : i32
    %c0_i32_0 = arith.constant 0 : i32
    %c0_i32_1 = arith.constant 0 : i32
    return %c0_i32, %c0_i32_0 : i32, i32
  }
  func.func @transform_3(%arg0: i32) -> (i32, i32) {
    %c0_i32 = arith.constant 0 : i32
    %c0_i32_0 = arith.constant 0 : i32
    %c0_i32_1 = arith.constant 0 : i32
    return %c0_i32, %c0_i32_0 : i32, i32
  }
  func.func @transform_4(%arg0: i32) -> (i32, i32) {
    %c0_i32 = arith.constant 0 : i32
    %c0_i32_0 = arith.constant 0 : i32
    %c0_i32_1 = arith.constant 0 : i32
    return %c0_i32, %c0_i32_0 : i32, i32
  }
  func.func @transform_5(%arg0: i32) -> (i32, i32) {
    %c0_i32 = arith.constant 0 : i32
    %c0_i32_0 = arith.constant 0 : i32
    %c0_i32_1 = arith.constant 0 : i32
    return %c0_i32, %c0_i32_0 : i32, i32
  }
  func.func @transform_6(%arg0: i32) -> (i32, i32) {
    %c0_i32 = arith.constant 0 : i32
    %c0_i32_0 = arith.constant 0 : i32
    %c0_i32_1 = arith.constant 0 : i32
    return %c0_i32, %c0_i32_0 : i32, i32
  }
  func.func @transform_7(%arg0: i32) -> (i32, i32) {
    %c0_i32 = arith.constant 0 : i32
    %c0_i32_0 = arith.constant 0 : i32
    %c0_i32_1 = arith.constant 0 : i32
    return %c0_i32, %c0_i32_0 : i32, i32
  }
  func.func @transform_8(%arg0: i32) -> (i32, i32) {
    %c0_i32 = arith.constant 0 : i32
    %c0_i32_0 = arith.constant 0 : i32
    %c0_i32_1 = arith.constant 0 : i32
    return %c0_i32, %c0_i32_0 : i32, i32
  }
  func.func @transform_9(%arg0: i32) -> (i32, i32) {
    %c0_i32 = arith.constant 0 : i32
    %c0_i32_0 = arith.constant 0 : i32
    %c0_i32_1 = arith.constant 0 : i32
    return %c0_i32, %c0_i32_0 : i32, i32
  }
  func.func @transform_10(%arg0: i32) -> (i32, i32) {
    %c0_i32 = arith.constant 0 : i32
    %c0_i32_0 = arith.constant 0 : i32
    %c0_i32_1 = arith.constant 0 : i32
    return %c0_i32, %c0_i32_0 : i32, i32
  }
  func.func @transform_11(%arg0: i32) -> (i32, i32, i32) {
    %c0_i32 = arith.constant 0 : i32
    %c0_i32_0 = arith.constant 0 : i32
    %c0_i32_1 = arith.constant 0 : i32
    return %arg0, %c0_i32, %c0_i32_0 : i32, i32, i32
  }
}

module attributes {stable_mosaic.version = 11 : i64} {
  func.func @kernel(%arg0: i32, %arg1: memref<2x16x48xbf16, #tpu.memory_space<vmem>>, %arg2: memref<3x48xf32, #tpu.memory_space<vmem>>, %arg3: memref<3x1xf32, #tpu.memory_space<vmem>>, %arg4: memref<3x48xf32, #tpu.memory_space<vmem>>, %arg5: memref<1x48xf32, #tpu.memory_space<vmem>>, %arg6: memref<1x48xf32, #tpu.memory_space<vmem>>, %arg7: memref<1x1xf32, #tpu.memory_space<smem>>, %arg8: memref<144x32xbf16, #tpu.memory_space<vmem>>, %arg9: memref<1x32xf32, #tpu.memory_space<vmem>>, %arg10: memref<96x32xbf16, #tpu.memory_space<vmem>>, %arg11: memref<1x32xf32, #tpu.memory_space<vmem>>, %arg12: memref<2x32xf32, #tpu.memory_space<vmem>>, %arg13: memref<2x1xf32, #tpu.memory_space<vmem>>, %arg14: memref<2x32xf32, #tpu.memory_space<vmem>>, %arg15: memref<1x32xf32, #tpu.memory_space<vmem>>, %arg16: memref<1x32xf32, #tpu.memory_space<vmem>>, %arg17: memref<1x1xf32, #tpu.memory_space<smem>>, %arg18: memref<2x16x32xbf16, #tpu.memory_space<vmem>>) attributes {dimension_semantics = [#tpu.dimension_semantics<parallel>], iteration_bounds = array<i64: 1>, scalar_prefetch = 0 : i64, scratch_operands = 0 : i64, tpu.core_type = #tpu.core_type<tc>, window_params = [{transform_indices = @transform_0, window_bounds = array<i64: 2, 16, 48>}, {pipeline_mode = #tpu.pipeline_mode<synchronous>, transform_indices = @transform_1, window_bounds = array<i64: 3, 48>}, {pipeline_mode = #tpu.pipeline_mode<synchronous>, transform_indices = @transform_2, window_bounds = array<i64: 3, 1>}, {pipeline_mode = #tpu.pipeline_mode<synchronous>, transform_indices = @transform_3, window_bounds = array<i64: 3, 48>}, {pipeline_mode = #tpu.pipeline_mode<synchronous>, transform_indices = @transform_4, window_bounds = array<i64: 1, 48>}, {pipeline_mode = #tpu.pipeline_mode<synchronous>, transform_indices = @transform_5, window_bounds = array<i64: 1, 48>}, {transform_indices = @transform_6, window_bounds = array<i64: 1, 1>}, {pipeline_mode = #tpu.pipeline_mode<synchronous>, transform_indices = @transform_7, window_bounds = array<i64: 144, 32>}, {pipeline_mode = #tpu.pipeline_mode<synchronous>, transform_indices = @transform_8, window_bounds = array<i64: 1, 32>}, {pipeline_mode = #tpu.pipeline_mode<synchronous>, transform_indices = @transform_9, window_bounds = array<i64: 96, 32>}, {pipeline_mode = #tpu.pipeline_mode<synchronous>, transform_indices = @transform_10, window_bounds = array<i64: 1, 32>}, {pipeline_mode = #tpu.pipeline_mode<synchronous>, transform_indices = @transform_11, window_bounds = array<i64: 2, 32>}, {pipeline_mode = #tpu.pipeline_mode<synchronous>, transform_indices = @transform_12, window_bounds = array<i64: 2, 1>}, {pipeline_mode = #tpu.pipeline_mode<synchronous>, transform_indices = @transform_13, window_bounds = array<i64: 2, 32>}, {pipeline_mode = #tpu.pipeline_mode<synchronous>, transform_indices = @transform_14, window_bounds = array<i64: 1, 32>}, {pipeline_mode = #tpu.pipeline_mode<synchronous>, transform_indices = @transform_15, window_bounds = array<i64: 1, 32>}, {transform_indices = @transform_16, window_bounds = array<i64: 1, 1>}, {transform_indices = @transform_17, window_bounds = array<i64: 2, 16, 32>}]} {
    %c0 = arith.constant 0 : index
    %c0_0 = arith.constant 0 : index
    %c0_1 = arith.constant 0 : index
    %0 = vector.load %arg1[%c0, %c0_0, %c0_1] : memref<2x16x48xbf16, #tpu.memory_space<vmem>>, vector<2x16x48xbf16>
    %c0_2 = arith.constant 0 : index
    %c0_3 = arith.constant 0 : index
    %1 = vector.load %arg2[%c0_2, %c0_3] : memref<3x48xf32, #tpu.memory_space<vmem>>, vector<3x48xf32>
    %c0_4 = arith.constant 0 : index
    %c0_5 = arith.constant 0 : index
    %2 = vector.load %arg3[%c0_4, %c0_5] : memref<3x1xf32, #tpu.memory_space<vmem>>, vector<3x1xf32>
    %c0_6 = arith.constant 0 : index
    %c0_7 = arith.constant 0 : index
    %3 = vector.load %arg4[%c0_6, %c0_7] : memref<3x48xf32, #tpu.memory_space<vmem>>, vector<3x48xf32>
    %c0_8 = arith.constant 0 : index
    %c0_9 = arith.constant 0 : index
    %4 = vector.load %arg5[%c0_8, %c0_9] : memref<1x48xf32, #tpu.memory_space<vmem>>, vector<1x48xf32>
    %c0_10 = arith.constant 0 : index
    %c0_11 = arith.constant 0 : index
    %5 = vector.load %arg6[%c0_10, %c0_11] : memref<1x48xf32, #tpu.memory_space<vmem>>, vector<1x48xf32>
    %c0_12 = arith.constant 0 : index
    %c0_13 = arith.constant 0 : index
    %6 = memref.load %arg7[%c0_12, %c0_13] : memref<1x1xf32, #tpu.memory_space<smem>>
    %7 = arith.extf %0 : vector<2x16x48xbf16> to vector<2x16x48xf32>
    %cst = arith.constant dense<0.000000e+00> : vector<2x48xf32>
    %8 = vector.multi_reduction <add>, %7, %cst [1] : vector<2x16x48xf32> to vector<2x48xf32>
    %9 = vector.shape_cast %8 : vector<2x48xf32> to vector<2x1x48xf32>
    %cst_14 = arith.constant 1.600000e+01 : f32
    %10 = vector.broadcast %cst_14 : f32 to vector<2x1x48xf32>
    %11 = arith.divf %9, %10 : vector<2x1x48xf32>
    %12 = arith.truncf %11 : vector<2x1x48xf32> to vector<2x1x48xbf16>
    %13 = arith.extf %12 : vector<2x1x48xbf16> to vector<2x1x48xf32>
    %14 = vector.shape_cast %1 : vector<3x48xf32> to vector<1x3x48xf32>
    %15 = vector.broadcast %14 : vector<1x3x48xf32> to vector<2x3x48xf32>
    %16 = vector.broadcast %13 : vector<2x1x48xf32> to vector<2x3x48xf32>
    %17 = arith.mulf %15, %16 : vector<2x3x48xf32>
    %cst_15 = arith.constant dense<0.000000e+00> : vector<2x3xf32>
    %18 = vector.multi_reduction <add>, %17, %cst_15 [2] : vector<2x3x48xf32> to vector<2x3xf32>
    %19 = vector.shape_cast %18 : vector<2x3xf32> to vector<2x3x1xf32>
    %20 = vector.shape_cast %2 : vector<3x1xf32> to vector<1x3x1xf32>
    %21 = vector.broadcast %20 : vector<1x3x1xf32> to vector<2x3x1xf32>
    %22 = arith.addf %19, %21 : vector<2x3x1xf32>
    %cst_16 = arith.constant 0.000000e+00 : f32
    %23 = vector.broadcast %cst_16 : f32 to vector<2x3x1xf32>
    %24 = arith.maximumf %22, %23 : vector<2x3x1xf32>
    %25 = vector.shape_cast %3 : vector<3x48xf32> to vector<1x3x48xf32>
    %26 = vector.broadcast %25 : vector<1x3x48xf32> to vector<2x3x48xf32>
    %27 = vector.broadcast %24 : vector<2x3x1xf32> to vector<2x3x48xf32>
    %28 = arith.mulf %26, %27 : vector<2x3x48xf32>
    %cst_17 = arith.constant dense<0.000000e+00> : vector<2x48xf32>
    %29 = vector.multi_reduction <add>, %28, %cst_17 [1] : vector<2x3x48xf32> to vector<2x48xf32>
    %30 = vector.shape_cast %29 : vector<2x48xf32> to vector<2x1x48xf32>
    %31 = vector.shape_cast %4 : vector<1x48xf32> to vector<1x1x48xf32>
    %32 = vector.broadcast %31 : vector<1x1x48xf32> to vector<2x1x48xf32>
    %33 = arith.addf %30, %32 : vector<2x1x48xf32>
    %34 = arith.negf %33 : vector<2x1x48xf32>
    %35 = math.exp %34 : vector<2x1x48xf32>
    %cst_18 = arith.constant 1.000000e+00 : f32
    %36 = vector.broadcast %cst_18 : f32 to vector<2x1x48xf32>
    %37 = arith.addf %36, %35 : vector<2x1x48xf32>
    %38 = arith.divf %36, %37 : vector<2x1x48xf32>
    %39 = arith.truncf %5 : vector<1x48xf32> to vector<1x48xbf16>
    %40 = vector.shape_cast %39 : vector<1x48xbf16> to vector<1x1x48xbf16>
    %41 = vector.broadcast %40 : vector<1x1x48xbf16> to vector<2x16x48xbf16>
    %42 = arith.mulf %0, %41 : vector<2x16x48xbf16>
    %43 = arith.extf %42 : vector<2x16x48xbf16> to vector<2x16x48xf32>
    %cst_19 = arith.constant dense<0.000000e+00> : vector<2x16xf32>
    %44 = vector.multi_reduction <add>, %43, %cst_19 [2] : vector<2x16x48xf32> to vector<2x16xf32>
    %45 = vector.shape_cast %44 : vector<2x16xf32> to vector<2x16x1xf32>
    %46 = arith.truncf %45 : vector<2x16x1xf32> to vector<2x16x1xbf16>
    %47 = arith.extf %46 : vector<2x16x1xbf16> to vector<2x16x1xf32>
    %48 = vector.broadcast %6 : f32 to vector<2x16x1xf32>
    %49 = arith.addf %47, %48 : vector<2x16x1xf32>
    %50 = arith.negf %49 : vector<2x16x1xf32>
    %51 = math.exp %50 : vector<2x16x1xf32>
    %cst_20 = arith.constant 1.000000e+00 : f32
    %52 = vector.broadcast %cst_20 : f32 to vector<2x16x1xf32>
    %53 = arith.addf %52, %51 : vector<2x16x1xf32>
    %54 = arith.divf %52, %53 : vector<2x16x1xf32>
    %55 = vector.broadcast %38 : vector<2x1x48xf32> to vector<2x16x48xf32>
    %56 = vector.broadcast %54 : vector<2x16x1xf32> to vector<2x16x48xf32>
    %57 = arith.addf %55, %56 : vector<2x16x48xf32>
    %58 = arith.truncf %57 : vector<2x16x48xf32> to vector<2x16x48xbf16>
    %59 = arith.mulf %0, %58 : vector<2x16x48xbf16>
    %c0_21 = arith.constant 0 : index
    %c0_22 = arith.constant 0 : index
    %60 = vector.load %arg8[%c0_21, %c0_22] : memref<144x32xbf16, #tpu.memory_space<vmem>>, vector<144x32xbf16>
    %c0_23 = arith.constant 0 : index
    %c0_24 = arith.constant 0 : index
    %61 = vector.load %arg9[%c0_23, %c0_24] : memref<1x32xf32, #tpu.memory_space<vmem>>, vector<1x32xf32>
    %cst_25 = arith.constant 0.000000e+00 : bf16
    %62 = vector.broadcast %cst_25 : bf16 to vector<2x1x48xbf16>
    %63 = vector.extract_strided_slice %59 {offsets = [0, 0, 0], sizes = [2, 15, 48], strides = [1, 1, 1]} : vector<2x16x48xbf16> to vector<2x15x48xbf16>
    %64 = tpu.concatenate %62, %63 in 1 : vector<2x1x48xbf16>, vector<2x15x48xbf16> -> vector<2x16x48xbf16>
    %65 = vector.extract_strided_slice %59 {offsets = [0, 1, 0], sizes = [2, 15, 48], strides = [1, 1, 1]} : vector<2x16x48xbf16> to vector<2x15x48xbf16>
    %66 = tpu.concatenate %65, %62 in 1 : vector<2x15x48xbf16>, vector<2x1x48xbf16> -> vector<2x16x48xbf16>
    %67 = tpu.concatenate %64, %59, %66 in 2 : vector<2x16x48xbf16>, vector<2x16x48xbf16>, vector<2x16x48xbf16> -> vector<2x16x144xbf16>
    %68 = vector.shape_cast %67 : vector<2x16x144xbf16> to vector<32x144xbf16>
    %cst_26 = arith.constant dense<0.000000e+00> : vector<32x32xf32>
    %69 = tpu.matmul %68, %60, %cst_26 {dimension_numbers = #tpu.dot_dimension_numbers<[1], [0], [0], [1], [0, 0, 1, 1], [], []>} : vector<32x144xbf16>, vector<144x32xbf16>, vector<32x32xf32> -> vector<32x32xf32>
    %70 = vector.broadcast %61 : vector<1x32xf32> to vector<32x32xf32>
    %71 = arith.addf %69, %70 : vector<32x32xf32>
    %cst_27 = arith.constant 0.000000e+00 : f32
    %72 = vector.broadcast %cst_27 : f32 to vector<32x32xf32>
    %73 = arith.maximumf %71, %72 : vector<32x32xf32>
    %74 = vector.shape_cast %73 : vector<32x32xf32> to vector<2x16x32xf32>
    %75 = arith.truncf %74 : vector<2x16x32xf32> to vector<2x16x32xbf16>
    %c0_28 = arith.constant 0 : index
    %c0_29 = arith.constant 0 : index
    %76 = vector.load %arg10[%c0_28, %c0_29] : memref<96x32xbf16, #tpu.memory_space<vmem>>, vector<96x32xbf16>
    %c0_30 = arith.constant 0 : index
    %c0_31 = arith.constant 0 : index
    %77 = vector.load %arg11[%c0_30, %c0_31] : memref<1x32xf32, #tpu.memory_space<vmem>>, vector<1x32xf32>
    %cst_32 = arith.constant 0.000000e+00 : bf16
    %78 = vector.broadcast %cst_32 : bf16 to vector<2x1x32xbf16>
    %79 = vector.extract_strided_slice %75 {offsets = [0, 0, 0], sizes = [2, 15, 32], strides = [1, 1, 1]} : vector<2x16x32xbf16> to vector<2x15x32xbf16>
    %80 = tpu.concatenate %78, %79 in 1 : vector<2x1x32xbf16>, vector<2x15x32xbf16> -> vector<2x16x32xbf16>
    %81 = vector.extract_strided_slice %75 {offsets = [0, 1, 0], sizes = [2, 15, 32], strides = [1, 1, 1]} : vector<2x16x32xbf16> to vector<2x15x32xbf16>
    %82 = tpu.concatenate %81, %78 in 1 : vector<2x15x32xbf16>, vector<2x1x32xbf16> -> vector<2x16x32xbf16>
    %83 = tpu.concatenate %80, %75, %82 in 2 : vector<2x16x32xbf16>, vector<2x16x32xbf16>, vector<2x16x32xbf16> -> vector<2x16x96xbf16>
    %84 = vector.shape_cast %83 : vector<2x16x96xbf16> to vector<32x96xbf16>
    %cst_33 = arith.constant dense<0.000000e+00> : vector<32x32xf32>
    %85 = tpu.matmul %84, %76, %cst_33 {dimension_numbers = #tpu.dot_dimension_numbers<[1], [0], [0], [1], [0, 0, 1, 1], [], []>} : vector<32x96xbf16>, vector<96x32xbf16>, vector<32x32xf32> -> vector<32x32xf32>
    %86 = vector.broadcast %77 : vector<1x32xf32> to vector<32x32xf32>
    %87 = arith.addf %85, %86 : vector<32x32xf32>
    %cst_34 = arith.constant 0.000000e+00 : f32
    %88 = vector.broadcast %cst_34 : f32 to vector<32x32xf32>
    %89 = arith.maximumf %87, %88 : vector<32x32xf32>
    %90 = vector.shape_cast %89 : vector<32x32xf32> to vector<2x16x32xf32>
    %c0_35 = arith.constant 0 : index
    %c0_36 = arith.constant 0 : index
    %91 = vector.load %arg12[%c0_35, %c0_36] : memref<2x32xf32, #tpu.memory_space<vmem>>, vector<2x32xf32>
    %c0_37 = arith.constant 0 : index
    %c0_38 = arith.constant 0 : index
    %92 = vector.load %arg13[%c0_37, %c0_38] : memref<2x1xf32, #tpu.memory_space<vmem>>, vector<2x1xf32>
    %c0_39 = arith.constant 0 : index
    %c0_40 = arith.constant 0 : index
    %93 = vector.load %arg14[%c0_39, %c0_40] : memref<2x32xf32, #tpu.memory_space<vmem>>, vector<2x32xf32>
    %c0_41 = arith.constant 0 : index
    %c0_42 = arith.constant 0 : index
    %94 = vector.load %arg15[%c0_41, %c0_42] : memref<1x32xf32, #tpu.memory_space<vmem>>, vector<1x32xf32>
    %c0_43 = arith.constant 0 : index
    %c0_44 = arith.constant 0 : index
    %95 = vector.load %arg16[%c0_43, %c0_44] : memref<1x32xf32, #tpu.memory_space<vmem>>, vector<1x32xf32>
    %c0_45 = arith.constant 0 : index
    %c0_46 = arith.constant 0 : index
    %96 = memref.load %arg17[%c0_45, %c0_46] : memref<1x1xf32, #tpu.memory_space<smem>>
    %cst_47 = arith.constant dense<0.000000e+00> : vector<2x32xf32>
    %97 = vector.multi_reduction <add>, %90, %cst_47 [1] : vector<2x16x32xf32> to vector<2x32xf32>
    %98 = vector.shape_cast %97 : vector<2x32xf32> to vector<2x1x32xf32>
    %cst_48 = arith.constant 1.600000e+01 : f32
    %99 = vector.broadcast %cst_48 : f32 to vector<2x1x32xf32>
    %100 = arith.divf %98, %99 : vector<2x1x32xf32>
    %101 = vector.shape_cast %91 : vector<2x32xf32> to vector<1x2x32xf32>
    %102 = vector.broadcast %101 : vector<1x2x32xf32> to vector<2x2x32xf32>
    %103 = vector.broadcast %100 : vector<2x1x32xf32> to vector<2x2x32xf32>
    %104 = arith.mulf %102, %103 : vector<2x2x32xf32>
    %cst_49 = arith.constant dense<0.000000e+00> : vector<2x2xf32>
    %105 = vector.multi_reduction <add>, %104, %cst_49 [2] : vector<2x2x32xf32> to vector<2x2xf32>
    %106 = vector.shape_cast %105 : vector<2x2xf32> to vector<2x2x1xf32>
    %107 = vector.shape_cast %92 : vector<2x1xf32> to vector<1x2x1xf32>
    %108 = vector.broadcast %107 : vector<1x2x1xf32> to vector<2x2x1xf32>
    %109 = arith.addf %106, %108 : vector<2x2x1xf32>
    %cst_50 = arith.constant 0.000000e+00 : f32
    %110 = vector.broadcast %cst_50 : f32 to vector<2x2x1xf32>
    %111 = arith.maximumf %109, %110 : vector<2x2x1xf32>
    %112 = vector.shape_cast %93 : vector<2x32xf32> to vector<1x2x32xf32>
    %113 = vector.broadcast %112 : vector<1x2x32xf32> to vector<2x2x32xf32>
    %114 = vector.broadcast %111 : vector<2x2x1xf32> to vector<2x2x32xf32>
    %115 = arith.mulf %113, %114 : vector<2x2x32xf32>
    %cst_51 = arith.constant dense<0.000000e+00> : vector<2x32xf32>
    %116 = vector.multi_reduction <add>, %115, %cst_51 [1] : vector<2x2x32xf32> to vector<2x32xf32>
    %117 = vector.shape_cast %116 : vector<2x32xf32> to vector<2x1x32xf32>
    %118 = vector.shape_cast %94 : vector<1x32xf32> to vector<1x1x32xf32>
    %119 = vector.broadcast %118 : vector<1x1x32xf32> to vector<2x1x32xf32>
    %120 = arith.addf %117, %119 : vector<2x1x32xf32>
    %121 = arith.negf %120 : vector<2x1x32xf32>
    %122 = math.exp %121 : vector<2x1x32xf32>
    %cst_52 = arith.constant 1.000000e+00 : f32
    %123 = vector.broadcast %cst_52 : f32 to vector<2x1x32xf32>
    %124 = arith.addf %123, %122 : vector<2x1x32xf32>
    %125 = arith.divf %123, %124 : vector<2x1x32xf32>
    %126 = vector.shape_cast %95 : vector<1x32xf32> to vector<1x1x32xf32>
    %127 = vector.broadcast %126 : vector<1x1x32xf32> to vector<2x16x32xf32>
    %128 = arith.mulf %90, %127 : vector<2x16x32xf32>
    %cst_53 = arith.constant dense<0.000000e+00> : vector<2x16xf32>
    %129 = vector.multi_reduction <add>, %128, %cst_53 [2] : vector<2x16x32xf32> to vector<2x16xf32>
    %130 = vector.shape_cast %129 : vector<2x16xf32> to vector<2x16x1xf32>
    %131 = vector.broadcast %96 : f32 to vector<2x16x1xf32>
    %132 = arith.addf %130, %131 : vector<2x16x1xf32>
    %133 = arith.negf %132 : vector<2x16x1xf32>
    %134 = math.exp %133 : vector<2x16x1xf32>
    %cst_54 = arith.constant 1.000000e+00 : f32
    %135 = vector.broadcast %cst_54 : f32 to vector<2x16x1xf32>
    %136 = arith.addf %135, %134 : vector<2x16x1xf32>
    %137 = arith.divf %135, %136 : vector<2x16x1xf32>
    %138 = vector.broadcast %125 : vector<2x1x32xf32> to vector<2x16x32xf32>
    %139 = vector.broadcast %137 : vector<2x16x1xf32> to vector<2x16x32xf32>
    %140 = arith.addf %138, %139 : vector<2x16x32xf32>
    %141 = arith.mulf %90, %140 : vector<2x16x32xf32>
    %142 = arith.truncf %141 : vector<2x16x32xf32> to vector<2x16x32xbf16>
    %c0_55 = arith.constant 0 : index
    %c0_56 = arith.constant 0 : index
    %c0_57 = arith.constant 0 : index
    %143 = vector.load %arg18[%c0_55, %c0_56, %c0_57] : memref<2x16x32xbf16, #tpu.memory_space<vmem>>, vector<2x16x32xbf16>
    tpu.vector_store %arg18[%c0_55, %c0_56, %c0_57], %142 {strides = array<i32>} : memref<2x16x32xbf16, #tpu.memory_space<vmem>>, vector<2x16x32xbf16>,
    return
  }
  func.func @transform_0(%arg0: i32) -> (i32, i32, i32) {
    %c0_i32 = arith.constant 0 : i32
    %c0_i32_0 = arith.constant 0 : i32
    %c0_i32_1 = arith.constant 0 : i32
    return %arg0, %c0_i32, %c0_i32_0 : i32, i32, i32
  }
  func.func @transform_1(%arg0: i32) -> (i32, i32) {
    %c0_i32 = arith.constant 0 : i32
    %c0_i32_0 = arith.constant 0 : i32
    %c0_i32_1 = arith.constant 0 : i32
    return %c0_i32, %c0_i32_0 : i32, i32
  }
  func.func @transform_2(%arg0: i32) -> (i32, i32) {
    %c0_i32 = arith.constant 0 : i32
    %c0_i32_0 = arith.constant 0 : i32
    %c0_i32_1 = arith.constant 0 : i32
    return %c0_i32, %c0_i32_0 : i32, i32
  }
  func.func @transform_3(%arg0: i32) -> (i32, i32) {
    %c0_i32 = arith.constant 0 : i32
    %c0_i32_0 = arith.constant 0 : i32
    %c0_i32_1 = arith.constant 0 : i32
    return %c0_i32, %c0_i32_0 : i32, i32
  }
  func.func @transform_4(%arg0: i32) -> (i32, i32) {
    %c0_i32 = arith.constant 0 : i32
    %c0_i32_0 = arith.constant 0 : i32
    %c0_i32_1 = arith.constant 0 : i32
    return %c0_i32, %c0_i32_0 : i32, i32
  }
  func.func @transform_5(%arg0: i32) -> (i32, i32) {
    %c0_i32 = arith.constant 0 : i32
    %c0_i32_0 = arith.constant 0 : i32
    %c0_i32_1 = arith.constant 0 : i32
    return %c0_i32, %c0_i32_0 : i32, i32
  }
  func.func @transform_6(%arg0: i32) -> (i32, i32) {
    %c0_i32 = arith.constant 0 : i32
    %c0_i32_0 = arith.constant 0 : i32
    %c0_i32_1 = arith.constant 0 : i32
    return %c0_i32, %c0_i32_0 : i32, i32
  }
  func.func @transform_7(%arg0: i32) -> (i32, i32) {
    %c0_i32 = arith.constant 0 : i32
    %c0_i32_0 = arith.constant 0 : i32
    %c0_i32_1 = arith.constant 0 : i32
    return %c0_i32, %c0_i32_0 : i32, i32
  }
  func.func @transform_8(%arg0: i32) -> (i32, i32) {
    %c0_i32 = arith.constant 0 : i32
    %c0_i32_0 = arith.constant 0 : i32
    %c0_i32_1 = arith.constant 0 : i32
    return %c0_i32, %c0_i32_0 : i32, i32
  }
  func.func @transform_9(%arg0: i32) -> (i32, i32) {
    %c0_i32 = arith.constant 0 : i32
    %c0_i32_0 = arith.constant 0 : i32
    %c0_i32_1 = arith.constant 0 : i32
    return %c0_i32, %c0_i32_0 : i32, i32
  }
  func.func @transform_10(%arg0: i32) -> (i32, i32) {
    %c0_i32 = arith.constant 0 : i32
    %c0_i32_0 = arith.constant 0 : i32
    %c0_i32_1 = arith.constant 0 : i32
    return %c0_i32, %c0_i32_0 : i32, i32
  }
  func.func @transform_11(%arg0: i32) -> (i32, i32) {
    %c0_i32 = arith.constant 0 : i32
    %c0_i32_0 = arith.constant 0 : i32
    %c0_i32_1 = arith.constant 0 : i32
    return %c0_i32, %c0_i32_0 : i32, i32
  }
  func.func @transform_12(%arg0: i32) -> (i32, i32) {
    %c0_i32 = arith.constant 0 : i32
    %c0_i32_0 = arith.constant 0 : i32
    %c0_i32_1 = arith.constant 0 : i32
    return %c0_i32, %c0_i32_0 : i32, i32
  }
  func.func @transform_13(%arg0: i32) -> (i32, i32) {
    %c0_i32 = arith.constant 0 : i32
    %c0_i32_0 = arith.constant 0 : i32
    %c0_i32_1 = arith.constant 0 : i32
    return %c0_i32, %c0_i32_0 : i32, i32
  }
  func.func @transform_14(%arg0: i32) -> (i32, i32) {
    %c0_i32 = arith.constant 0 : i32
    %c0_i32_0 = arith.constant 0 : i32
    %c0_i32_1 = arith.constant 0 : i32
    return %c0_i32, %c0_i32_0 : i32, i32
  }
  func.func @transform_15(%arg0: i32) -> (i32, i32) {
    %c0_i32 = arith.constant 0 : i32
    %c0_i32_0 = arith.constant 0 : i32
    %c0_i32_1 = arith.constant 0 : i32
    return %c0_i32, %c0_i32_0 : i32, i32
  }
  func.func @transform_16(%arg0: i32) -> (i32, i32) {
    %c0_i32 = arith.constant 0 : i32
    %c0_i32_0 = arith.constant 0 : i32
    %c0_i32_1 = arith.constant 0 : i32
    return %c0_i32, %c0_i32_0 : i32, i32
  }
  func.func @transform_17(%arg0: i32) -> (i32, i32, i32) {
    %c0_i32 = arith.constant 0 : i32
    %c0_i32_0 = arith.constant 0 : i32
    %c0_i32_1 = arith.constant 0 : i32
    return %arg0, %c0_i32, %c0_i32_0 : i32, i32, i32
  }
}

</mosaic_0001>

<llo_original>
// kernel: _lambda_.3
$region0: #{_lambda_.3}
  #allocation0 [shape = 'u32[]', space=smem, size = 0x4, offset = 0x4, fixed_abs, tag = 'smem constant byte address 0x4 - core index']
  #allocation1 [shape = 'u32[144,128]{1,0:T(1,128)}', space=vmem, size = 0x12000, scoped, tag = 'internal scratch']
  #allocation2 [shape = 'f32[1,1]{1,0:T(1,128)S(1)}', space=vmem, size = 0x200, scoped, tag = 'scoped memory for _lambda_.3']
  #allocation3 [shape = 'f32[1,1]{1,0:T(1,128)S(6)}', space=smem, size = 0x200, scoped, tag = 'scoped memory for _lambda_.3']
  %s0 = inlined_call_operand.vmem [shape: bf16[2,32,32], index: 0, kind: input, shape index: {}]
  %s1 = inlined_call_operand.vmem [shape: bf16[96,16], index: 1, kind: input, shape index: {}]
  %s2 = inlined_call_operand.vmem [shape: f32[1,16], index: 2, kind: input, shape index: {}]
  %s3 = inlined_call_operand.vmem [shape: bf16[48,16], index: 3, kind: input, shape index: {}]
  %s4 = inlined_call_operand.vmem [shape: f32[1,16], index: 4, kind: input, shape index: {}]
  %s5 = inlined_call_operand.vmem [shape: f32[1,16], index: 5, kind: input, shape index: {}]
  %s6 = inlined_call_operand.<no memory space> [shape: f32[1,1], index: 6, kind: input, shape index: {}]
  %s7 = inlined_call_operand.vmem [shape: f32[1,16], index: 7, kind: input, shape index: {}]
  %s8 = inlined_call_operand.vmem [shape: f32[1,16], index: 8, kind: input, shape index: {}]
  %s9 = inlined_call_operand.vmem [shape: f32[1,16], index: 9, kind: input, shape index: {}]
  %s10 = inlined_call_operand.<no memory space> [shape: f32[1,1], index: 10, kind: input, shape index: {}]
  %s11 = inlined_call_operand.vmem [shape: bf16[2,32,16], index: 11, kind: output, shape index: {}]
  %s12 = sld [smem:[#allocation0]]
  $region54: #{_lambda_.3} parent=0
    _
  %s14 = ssub.s32 1, %s12
  %s15 = scalar_select 0, %s14, %s12
  %v16 = vstv %s6
  %17 = vst [vmem:[#allocation2] sm:$0x1] %v16
  %18 = sst [smem:[#allocation3]] %s10
  // Predicated region
  $region2: #{_lambda_.3} parent=0 // pred_check
    _
  $region3: #{_lambda_.3} parent=0 // pred_check_branch
    %20 = sbr.rel (0) target = $region5
  $region4: #{_lambda_.3} parent=0 // pred_region
    _
  $region5: #{_lambda_.3} parent=0 // pred_fallthru
    _
  // Predicated region
  $region6: #{_lambda_.3} parent=0 // pred_check
    _
  $region7: #{_lambda_.3} parent=0 // pred_check_branch
    %22 = sbr.rel (0) target = $region9
  $region8: #{_lambda_.3} parent=0 // pred_region
    _
  $region9: #{_lambda_.3} parent=0 // pred_fallthru
    _
  // Predicated region
  $region10: #{_lambda_.3} parent=0 // pred_check
    _
  $region11: #{_lambda_.3} parent=0 // pred_check_branch
    %24 = sbr.rel (0) target = $region13
  $region12: #{_lambda_.3} parent=0 // pred_region
    _
  $region13: #{_lambda_.3} parent=0 // pred_fallthru
    _
  // Predicated region
  $region14: #{_lambda_.3} parent=0 // pred_check
    _
  $region15: #{_lambda_.3} parent=0 // pred_check_branch
    %26 = sbr.rel (0) target = $region17
  $region16: #{_lambda_.3} parent=0 // pred_region
    _
  $region17: #{_lambda_.3} parent=0 // pred_fallthru
    _
  // Predicated region
  $region18: #{_lambda_.3} parent=0 // pred_check
    _
  $region19: #{_lambda_.3} parent=0 // pred_check_branch
    %28 = sbr.rel (0) target = $region21
  $region20: #{_lambda_.3} parent=0 // pred_region
    _
  $region21: #{_lambda_.3} parent=0 // pred_fallthru
    _
  // Predicated region
  $region22: #{_lambda_.3} parent=0 // pred_check
    _
  $region23: #{_lambda_.3} parent=0 // pred_check_branch
    %30 = sbr.rel (0) target = $region25
  $region24: #{_lambda_.3} parent=0 // pred_region
    _
  $region25: #{_lambda_.3} parent=0 // pred_fallthru
    _
  // Predicated region
  $region26: #{_lambda_.3} parent=0 // pred_check
    _
  $region27: #{_lambda_.3} parent=0 // pred_check_branch
    %32 = sbr.rel (0) target = $region29
  $region28: #{_lambda_.3} parent=0 // pred_region
    _
  $region29: #{_lambda_.3} parent=0 // pred_fallthru
    _
  // Predicated region
  $region30: #{_lambda_.3} parent=0 // pred_check
    _
  $region31: #{_lambda_.3} parent=0 // pred_check_branch
    %34 = sbr.rel (0) target = $region33
  $region32: #{_lambda_.3} parent=0 // pred_region
    _
  $region33: #{_lambda_.3} parent=0 // pred_fallthru
    _
  // Predicated region
  $region34: #{_lambda_.3} parent=0 // pred_check
    _
  $region35: #{_lambda_.3} parent=0 // pred_check_branch
    %36 = sbr.rel (0) target = $region37
  $region36: #{_lambda_.3} parent=0 // pred_region
    _
  $region37: #{_lambda_.3} parent=0 // pred_fallthru
    _
  // Predicated region
  $region38: #{_lambda_.3} parent=0 // pred_check
    _
  $region39: #{_lambda_.3} parent=0 // pred_check_branch
    %38 = sbr.rel (0) target = $region41
  $region40: #{_lambda_.3} parent=0 // pred_region
    _
  $region41: #{_lambda_.3} parent=0 // pred_fallthru
    _
  // Predicated region
  $region42: #{_lambda_.3} parent=0 // pred_check
    _
  $region43: #{_lambda_.3} parent=0 // pred_check_branch
    %40 = sbr.rel (0) target = $region45
  $region44: #{_lambda_.3} parent=0 // pred_region
    _
  $region45: #{_lambda_.3} parent=0 // pred_fallthru
    _
  %v42 = vld [vmem:[%s0] sm:$0xf]
  %v43 = vld [vmem:[%s0 + $0x4] sm:$0xf]
  %v44 = vld [vmem:[%s0 + $0x8] sm:$0xf]
  %v45 = vld [vmem:[%s0 + $0xc] sm:$0xf]
  %v46 = vld [vmem:[%s0 + $0x10] sm:$0xf]
  %v47 = vld [vmem:[%s0 + $0x14] sm:$0xf]
  %v48 = vld [vmem:[%s0 + $0x18] sm:$0xf]
  %v49 = vld [vmem:[%s0 + $0x1c] sm:$0xf]
  %v50 = vld [vmem:[%s1] sm:$0xf]
  %v51 = vld [vmem:[%s1 + $0x4] sm:$0xf]
  %v52 = vld [vmem:[%s1 + $0x8] sm:$0xf]
  %v53 = vld [vmem:[%s1 + $0xc] sm:$0xf]
  %v54 = vld [vmem:[%s1 + $0x10] sm:$0xf]
  %v55 = vld [vmem:[%s1 + $0x14] sm:$0xf]
  %v56 = vld [vmem:[%s1 + $0x18] sm:$0xf]
  %v57 = vld [vmem:[%s1 + $0x1c] sm:$0xf]
  %v58 = vld [vmem:[%s1 + $0x20] sm:$0xf]
  %v59 = vld [vmem:[%s1 + $0x24] sm:$0xf]
  %v60 = vld [vmem:[%s1 + $0x28] sm:$0xf]
  %v61 = vld [vmem:[%s1 + $0x2c] sm:$0xf]
  %v62 = vld [vmem:[%s2] sm:$0x1]
  %v71 = vunpack.c.l.b16 %v42
  %v72 = vunpack.c.l.b16 %v43
  %v73 = vunpack.c.l.b16 %v44
  %v74 = vunpack.c.l.b16 %v45
  %v75 = vunpack.c.l.b16 %v46
  %v76 = vunpack.c.l.b16 %v47
  %v77 = vunpack.c.l.b16 %v48
  %v78 = vunpack.c.l.b16 %v49
  %v79 = vpack.c.b16 %v72, %v71
  %v80 = vpack.c.b16 %v74, %v73
  %v81 = vpack.c.b16 %v76, %v75
  %v82 = vpack.c.b16 %v78, %v77
  %vm83 = vsmask.f32 256
  %v85 = vshrl.u32 %v79, 16
  %v87 = vrot.slane %v85, 7
  %v88 = vshll.u32 %v79, 16
  %v90 = vor.u32 %v87, %v88
  %v92 = vshrl.u32 %v80, 16
  %v94 = vrot.slane %v92, 7
  %v95 = vshll.u32 %v80, 16
  %v97 = vor.u32 %v94, %v95
  %v98 = vsel %vm83, %v87, %v97
  %v100 = vshrl.u32 %v81, 16
  %v102 = vrot.slane %v100, 7
  %v103 = vshll.u32 %v81, 16
  %v105 = vor.u32 %v102, %v103
  %v107 = vshrl.u32 %v82, 16
  %v109 = vrot.slane %v107, 7
  %v110 = vshll.u32 %v82, 16
  %v112 = vor.u32 %v109, %v110
  %v113 = vsel %vm83, %v102, %v112
  %vm116 = vcmask 1040384
  %vm117 = vmand %vm116, %vm83
  %v118 = vsel %vm117, 0, %v90
  %v119 = vsel %vm117, 0, %v105
  %vm120 = vsmask.f32 7424
  %v121 = vrot.slane %v88, 1
  %v122 = vor.u32 %v85, %v121
  %v123 = vrot.slane %v95, 1
  %v124 = vsel %vm120, %v122, %v123
  %v125 = vor.u32 %v92, %v123
  %v126 = vrot.slane %v103, 1
  %v127 = vor.u32 %v100, %v126
  %v128 = vrot.slane %v110, 1
  %v129 = vsel %vm120, %v127, %v128
  %v130 = vor.u32 %v107, %v128
  %vm133 = vcmask 1047552
  %vm134 = vmand %vm133, %vm120
  %v135 = vsel %vm134, %v125, 0
  %v136 = vsel %vm134, %v130, 0
  %137 = vrot.lane.b32.xlu0 %v79, 32
  %v138 = vpop.permute.xlu0 %137
  %139 = vrot.lane.b32.xlu0 %v80, 32
  %v140 = vpop.permute.xlu0 %139
  %141 = vrot.lane.b32.xlu0 %v81, 32
  %v142 = vpop.permute.xlu0 %141
  %143 = vrot.lane.b32.xlu0 %v82, 32
  %v144 = vpop.permute.xlu0 %143
  %147 = vrot.lane.b32.xlu0 %v124, 64
  %v148 = vpop.permute.xlu0 %147
  %149 = vrot.lane.b32.xlu0 %v135, 64
  %v150 = vpop.permute.xlu0 %149
  %151 = vrot.lane.b32.xlu0 %v129, 64
  %v152 = vpop.permute.xlu0 %151
  %153 = vrot.lane.b32.xlu0 %v136, 64
  %v154 = vpop.permute.xlu0 %153
  %vm155 = vcmask 261120
  %v158 = vsel %vm155, %v118, %v138
  %v161 = vsel %vm155, %v98, %v140
  %v164 = vsel %vm155, %v119, %v142
  %v167 = vsel %vm155, %v113, %v144
  %vm168 = vcmask 523264
  %v170 = vsel %vm168, %v158, %v148
  %v172 = vsel %vm168, %v161, %v150
  %v174 = vsel %vm168, %v164, %v152
  %v176 = vsel %vm168, %v167, %v154
  %v178 = vlaneseq
  %v179 = vshrl.u32 %v178, 7
  %v180 = vsub.s32 0, %v179
  %v181 = vrot.slane %v62, %v180
  %v195 = vunpack.c.l.b16 %v50
  %v196 = vunpack.c.l.b16 %v51
  %v197 = vunpack.c.l.b16 %v52
  %v198 = vunpack.c.l.b16 %v53
  %v199 = vunpack.c.l.b16 %v54
  %v200 = vunpack.c.l.b16 %v55
  %v201 = vunpack.c.l.b16 %v56
  %v202 = vunpack.c.l.b16 %v57
  %v203 = vunpack.c.l.b16 %v58
  %v204 = vunpack.c.l.b16 %v59
  %v205 = vunpack.c.l.b16 %v60
  %v206 = vunpack.c.l.b16 %v61
  %v207 = vpack.c.b16 %v196, %v195
  %v208 = vpack.c.b16 %v198, %v197
  %v209 = vpack.c.b16 %v200, %v199
  %v210 = vpack.c.b16 %v202, %v201
  %v211 = vpack.c.b16 %v204, %v203
  %v212 = vpack.c.b16 %v206, %v205
  %vm219 = vcmask 785408
  %v220 = vsel %vm219, %v170, 0
  %v222 = vsel %vm219, %v172, 0
  %v224 = vsel %vm219, %v174, 0
  %v226 = vsel %vm219, %v176, 0
  %228 = vmatprep.subr.bf16.mxu0 0
  %229 = vmatpush1.bf16.msra.mxu0 0
  %230 = vmatprep.subr.bf16.mxu0 0
  %231 = vmatpush1.bf16.msra.mxu0 0
  %232 = vmatprep.subr.bf16.mxu0 0
  %233 = vmatpush1.bf16.msra.mxu0 %v212
  %234 = vmatprep.subr.bf16.mxu0 0
  %235 = vmatpush1.bf16.msra.mxu0 %v211
  %236 = vmatprep.subr.bf16.mxu0 0
  %237 = vmatpush1.bf16.msra.mxu0 %v210
  %238 = vmatprep.subr.bf16.mxu0 0
  %239 = vmatpush1.bf16.msra.mxu0 %v209
  %240 = vmatprep.subr.bf16.mxu0 0
  %241 = vmatpush1.bf16.msra.mxu0 %v208
  %242 = vmatprep.subr.bf16.mxu0 0
  %243 = vmatpush1.bf16.msra.mxu0 %v207
  %244 = vmatprep.subr.bf16.mxu0 0
  %245 = vmatpush2.bf16.msra.mxu0 0
  %246 = vmatprep.subr.bf16.mxu0 0
  %247 = vmatpush2.bf16.msra.mxu0 0
  %248 = vmatprep.subr.bf16.mxu0 0
  %249 = vmatpush2.bf16.msra.mxu0 0
  %250 = vmatprep.subr.bf16.mxu0 0
  %251 = vmatpush2.bf16.msra.mxu0 0
  %252 = vmatprep.subr.bf16.mxu0 0
  %253 = vmatpush2.bf16.msra.mxu0 0
  %254 = vmatprep.subr.bf16.mxu0 0
  %255 = vmatpush2.bf16.msra.mxu0 0
  %256 = vmatprep.subr.bf16.mxu0 0
  %257 = vmatpush2.bf16.msra.mxu0 0
  %258 = vmatprep.subr.bf16.mxu0 0
  %259 = vmatpush2.bf16.msra.mxu0 0
  %260 = vmatprep.mubr.bf16.mxu0 0
  %261 = vmatmul.mubr.bf16.gmra.mxu0 %v220
  %v262 = vpop.f32.mrf.mxu0
  %v263 = vadd.f32 %v181, %v262
  %v264 = vpop.f32.mrf.mxu0
  %v265 = vpop.f32.mrf.mxu0
  %v266 = vadd.f32 %v181, %v265
  %v267 = vpop.f32.mrf.mxu0
  %268 = vmatprep.mubr.bf16.mxu0 0
  %269 = vmatmul.mubr.bf16.gmra.mxu0 %v222
  %v270 = vpop.f32.mrf.mxu0
  %v271 = vadd.f32 %v181, %v270
  %v272 = vpop.f32.mrf.mxu0
  %v273 = vpop.f32.mrf.mxu0
  %v274 = vadd.f32 %v181, %v273
  %v275 = vpop.f32.mrf.mxu0
  %276 = vmatprep.mubr.bf16.mxu0 0
  %277 = vmatmul.mubr.bf16.gmra.mxu0 %v224
  %v278 = vpop.f32.mrf.mxu0
  %v279 = vadd.f32 %v181, %v278
  %v280 = vpop.f32.mrf.mxu0
  %v281 = vpop.f32.mrf.mxu0
  %v282 = vadd.f32 %v181, %v281
  %v283 = vpop.f32.mrf.mxu0
  %284 = vmatprep.mubr.bf16.mxu0 0
  %285 = vmatmul.mubr.bf16.gmra.mxu0 %v226
  %v286 = vpop.f32.mrf.mxu0
  %v287 = vadd.f32 %v181, %v286
  %v288 = vpop.f32.mrf.mxu0
  %v289 = vpop.f32.mrf.mxu0
  %v290 = vadd.f32 %v181, %v289
  %v291 = vpop.f32.mrf.mxu0
  %292 = vdwg.mxu0
  %v293 = vmax.f32 %v263, 0.0
  %v294 = vmax.f32 %v266, 0.0
  %v295 = vmax.f32 %v271, 0.0
  %v296 = vmax.f32 %v274, 0.0
  %v297 = vmax.f32 %v279, 0.0
  %v298 = vmax.f32 %v282, 0.0
  %v299 = vmax.f32 %v287, 0.0
  %v300 = vmax.f32 %v290, 0.0
  %v301 = vpack.c.bf16 %v294, %v293
  %v302 = vpack.c.bf16 %v296, %v295
  %v303 = vpack.c.bf16 %v298, %v297
  %v304 = vpack.c.bf16 %v300, %v299
  %v305 = vld [vmem:[%s3] sm:$0xf]
  %v306 = vld [vmem:[%s3 + $0x4] sm:$0xf]
  %v307 = vld [vmem:[%s3 + $0x8] sm:$0xf]
  %v308 = vld [vmem:[%s3 + $0xc] sm:$0xf]
  %v309 = vld [vmem:[%s3 + $0x10] sm:$0xf]
  %v310 = vld [vmem:[%s3 + $0x14] sm:$0xf]
  %v311 = vld [vmem:[%s4] sm:$0x1]
  %v313 = vshrl.u32 %v301, 16
  %v315 = vrot.slane %v313, 7
  %v316 = vshll.u32 %v301, 16
  %v318 = vor.u32 %v315, %v316
  %v320 = vshrl.u32 %v302, 16
  %v322 = vrot.slane %v320, 7
  %v323 = vshll.u32 %v302, 16
  %v325 = vor.u32 %v322, %v323
  %v326 = vsel %vm83, %v315, %v325
  %v328 = vshrl.u32 %v303, 16
  %v330 = vrot.slane %v328, 7
  %v331 = vshll.u32 %v303, 16
  %v333 = vor.u32 %v330, %v331
  %v335 = vshrl.u32 %v304, 16
  %v337 = vrot.slane %v335, 7
  %v338 = vshll.u32 %v304, 16
  %v340 = vor.u32 %v337, %v338
  %v341 = vsel %vm83, %v330, %v340
  %v344 = vsel %vm117, 0, %v318
  %v345 = vsel %vm117, 0, %v333
  %v346 = vrot.slane %v316, 1
  %v347 = vor.u32 %v313, %v346
  %v348 = vrot.slane %v323, 1
  %v349 = vsel %vm120, %v347, %v348
  %v350 = vor.u32 %v320, %v348
  %v351 = vrot.slane %v331, 1
  %v352 = vor.u32 %v328, %v351
  %v353 = vrot.slane %v338, 1
  %v354 = vsel %vm120, %v352, %v353
  %v355 = vor.u32 %v335, %v353
  %v358 = vsel %vm134, %v350, 0
  %v359 = vsel %vm134, %v355, 0
  %364 = vrot.lane.b32.xlu0 %v301, 16
  %v365 = vpop.permute.xlu0 %364
  %366 = vrot.lane.b32.xlu0 %v302, 16
  %v367 = vpop.permute.xlu0 %366
  %368 = vrot.lane.b32.xlu0 %v303, 16
  %v369 = vpop.permute.xlu0 %368
  %370 = vrot.lane.b32.xlu0 %v304, 16
  %v371 = vpop.permute.xlu0 %370
  %374 = vrot.lane.b32.xlu0 %v349, 32
  %v375 = vpop.permute.xlu0 %374
  %376 = vrot.lane.b32.xlu0 %v358, 32
  %v377 = vpop.permute.xlu0 %376
  %378 = vrot.lane.b32.xlu0 %v354, 32
  %v379 = vpop.permute.xlu0 %378
  %380 = vrot.lane.b32.xlu0 %v359, 32
  %v381 = vpop.permute.xlu0 %380
  %vm382 = vcmask 130048
  %v385 = vsel %vm382, %v344, %v365
  %v388 = vsel %vm382, %v326, %v367
  %v391 = vsel %vm382, %v345, %v369
  %v394 = vsel %vm382, %v341, %v371
  %v396 = vsel %vm155, %v385, %v375
  %v398 = vsel %vm155, %v388, %v377
  %v400 = vsel %vm155, %v391, %v379
  %v402 = vsel %vm155, %v394, %v381
  %v404 = vlaneseq
  %v405 = vshrl.u32 %v404, 7
  %v406 = vsub.s32 0, %v405
  %v407 = vrot.slane %v311, %v406
  %v415 = vunpack.c.l.b16 %v305
  %v416 = vunpack.c.l.b16 %v306
  %v417 = vunpack.c.l.b16 %v307
  %v418 = vunpack.c.l.b16 %v308
  %v419 = vunpack.c.l.b16 %v309
  %v420 = vunpack.c.l.b16 %v310
  %v421 = vpack.c.b16 %v416, %v415
  %v422 = vpack.c.b16 %v418, %v417
  %v423 = vpack.c.b16 %v420, %v419
  %vm427 = vcmask 392192
  %v428 = vsel %vm427, %v396, 0
  %v430 = vsel %vm427, %v398, 0
  %v432 = vsel %vm427, %v400, 0
  %v434 = vsel %vm427, %v402, 0
  %436 = vmatprep.subr.bf16.mxu0 0
  %437 = vmatpush1.bf16.msra.mxu0 0
  %438 = vmatprep.subr.bf16.mxu0 0
  %439 = vmatpush1.bf16.msra.mxu0 0
  %440 = vmatprep.subr.bf16.mxu0 0
  %441 = vmatpush1.bf16.msra.mxu0 0
  %442 = vmatprep.subr.bf16.mxu0 0
  %443 = vmatpush1.bf16.msra.mxu0 0
  %444 = vmatprep.subr.bf16.mxu0 0
  %445 = vmatpush1.bf16.msra.mxu0 0
  %446 = vmatprep.subr.bf16.mxu0 0
  %447 = vmatpush1.bf16.msra.mxu0 %v423
  %448 = vmatprep.subr.bf16.mxu0 0
  %449 = vmatpush1.bf16.msra.mxu0 %v422
  %450 = vmatprep.subr.bf16.mxu0 0
  %451 = vmatpush1.bf16.msra.mxu0 %v421
  %452 = vmatprep.subr.bf16.mxu0 0
  %453 = vmatpush2.bf16.msra.mxu0 0
  %454 = vmatprep.subr.bf16.mxu0 0
  %455 = vmatpush2.bf16.msra.mxu0 0
  %456 = vmatprep.subr.bf16.mxu0 0
  %457 = vmatpush2.bf16.msra.mxu0 0
  %458 = vmatprep.subr.bf16.mxu0 0
  %459 = vmatpush2.bf16.msra.mxu0 0
  %460 = vmatprep.subr.bf16.mxu0 0
  %461 = vmatpush2.bf16.msra.mxu0 0
  %462 = vmatprep.subr.bf16.mxu0 0
  %463 = vmatpush2.bf16.msra.mxu0 0
  %464 = vmatprep.subr.bf16.mxu0 0
  %465 = vmatpush2.bf16.msra.mxu0 0
  %466 = vmatprep.subr.bf16.mxu0 0
  %467 = vmatpush2.bf16.msra.mxu0 0
  %468 = vmatprep.mubr.bf16.mxu0 0
  %469 = vmatmul.mubr.bf16.gmra.mxu0 %v428
  %v470 = vpop.f32.mrf.mxu0
  %v471 = vadd.f32 %v407, %v470
  %v472 = vpop.f32.mrf.mxu0
  %v473 = vpop.f32.mrf.mxu0
  %v474 = vadd.f32 %v407, %v473
  %v475 = vpop.f32.mrf.mxu0
  %476 = vmatprep.mubr.bf16.mxu0 0
  %477 = vmatmul.mubr.bf16.gmra.mxu0 %v430
  %v478 = vpop.f32.mrf.mxu0
  %v479 = vadd.f32 %v407, %v478
  %v480 = vpop.f32.mrf.mxu0
  %v481 = vpop.f32.mrf.mxu0
  %v482 = vadd.f32 %v407, %v481
  %v483 = vpop.f32.mrf.mxu0
  %484 = vmatprep.mubr.bf16.mxu0 0
  %485 = vmatmul.mubr.bf16.gmra.mxu0 %v432
  %v486 = vpop.f32.mrf.mxu0
  %v487 = vadd.f32 %v407, %v486
  %v488 = vpop.f32.mrf.mxu0
  %v489 = vpop.f32.mrf.mxu0
  %v490 = vadd.f32 %v407, %v489
  %v491 = vpop.f32.mrf.mxu0
  %492 = vmatprep.mubr.bf16.mxu0 0
  %493 = vmatmul.mubr.bf16.gmra.mxu0 %v434
  %v494 = vpop.f32.mrf.mxu0
  %v495 = vadd.f32 %v407, %v494
  %v496 = vpop.f32.mrf.mxu0
  %v497 = vpop.f32.mrf.mxu0
  %v498 = vadd.f32 %v407, %v497
  %v499 = vpop.f32.mrf.mxu0
  %500 = vdwg.mxu0
  %v501 = vmax.f32 %v471, 0.0
  %v502 = vmax.f32 %v474, 0.0
  %v503 = vmax.f32 %v479, 0.0
  %v504 = vmax.f32 %v482, 0.0
  %v505 = vmax.f32 %v487, 0.0
  %v506 = vmax.f32 %v490, 0.0
  %v507 = vmax.f32 %v495, 0.0
  %v508 = vmax.f32 %v498, 0.0
  %v509 = vld [vmem:[%s5] sm:$0x1]
  %v510 = vld [vmem:[#allocation2] sm:$0x1]
  %v511 = vld [vmem:[%s7] sm:$0x1]
  %v512 = vld [vmem:[%s8] sm:$0x1]
  %v513 = vld [vmem:[%s9] sm:$0x1]
  %s514 = sld [smem:[#allocation3]]
  %v515 = vsel %vm382, %v501, 0.0
  %v516 = vsel %vm382, %v502, 0.0
  %v517 = vadd.f32 %v515, %v516
  %v518 = vsel %vm382, %v503, 0.0
  %v519 = vadd.f32 %v517, %v518
  %v520 = vsel %vm382, %v504, 0.0
  %v521 = vadd.f32 %v519, %v520
  %v522 = vrot.slane %v521, 4
  %v523 = vadd.f32 %v521, %v522
  %v524 = vrot.slane %v523, 2
  %v525 = vadd.f32 %v523, %v524
  %v526 = vrot.slane %v525, 1
  %v527 = vadd.f32 %v525, %v526
  %v528 = vsel %vm382, %v505, 0.0
  %v529 = vsel %vm382, %v506, 0.0
  %v530 = vadd.f32 %v528, %v529
  %v531 = vsel %vm382, %v507, 0.0
  %v532 = vadd.f32 %v530, %v531
  %v533 = vsel %vm382, %v508, 0.0
  %v534 = vadd.f32 %v532, %v533
  %v535 = vrot.slane %v534, 4
  %v536 = vadd.f32 %v534, %v535
  %v537 = vrot.slane %v536, 2
  %v538 = vadd.f32 %v536, %v537
  %v539 = vrot.slane %v538, 1
  %v540 = vadd.f32 %v538, %v539
  %v541 = vrcp.pop 32.0
  %v542 = vmul.f32 %v527, %v541
  %v543 = vmul.f32 %v540, %v541
  %v544 = vmul.f32 %v509, %v542
  %v545 = vmul.f32 %v509, %v543
  %vm546 = vcmask 122880
  %v547 = vsel %vm546, %v544, 0.0
  %548 = vadd.xlane.f32.xlu0 %v547
  %v549 = vpop.xlane.xlu0 %548
  %v550 = vsel %vm546, %v545, 0.0
  %551 = vadd.xlane.f32.xlu0 %v550
  %v552 = vpop.xlane.xlu0 %551
  %v553 = vadd.f32 %v549, %v510
  %v554 = vadd.f32 %v552, %v510
  %v555 = vmax.f32 %v553, 0.0
  %v556 = vmax.f32 %v554, 0.0
  %558 = vset.pattern.permute.xlu0 0
  %559 = vperm.xlu0 %558, %v555
  %v560 = vpop.permute.xlu0 %559
  %563 = vset.pattern.permute.xlu0 0
  %564 = vperm.xlu0 %563, %v556
  %v565 = vpop.permute.xlu0 %564
  %v567 = vmul.f32 %v511, %v560
  %v568 = vmul.f32 %v511, %v565
  %v569 = vadd.f32 %v567, 0.0
  %v570 = vadd.f32 %v568, 0.0
  %v571 = vadd.f32 %v569, %v512
  %v572 = vadd.f32 %v570, %v512
  %v573 = vxor.u32 %v571, 2147483648
  %v574 = vxor.u32 %v572, 2147483648
  %v575 = vmul.f32 %v573, 1.442695
  %v576 = vpow.pop %v575
  %v577 = vmul.f32 %v574, 1.442695
  %v578 = vpow.pop %v577
  %v579 = vadd.f32 %v576, 1.0
  %v580 = vadd.f32 %v578, 1.0
  %v581 = vrcp.pop %v579
  %v582 = vmul.f32 1.0, %v581
  %v583 = vrcp.pop %v580
  %v584 = vmul.f32 1.0, %v583
  %v586 = vlaneseq
  %v587 = vshrl.u32 %v586, 7
  %v588 = vsub.s32 0, %v587
  %v589 = vrot.slane %v513, %v588
  %v591 = vmul.f32 %v501, %v589
  %v592 = vmul.f32 %v502, %v589
  %v593 = vmul.f32 %v503, %v589
  %v594 = vmul.f32 %v504, %v589
  %v595 = vmul.f32 %v505, %v589
  %v596 = vmul.f32 %v506, %v589
  %v597 = vmul.f32 %v507, %v589
  %v598 = vmul.f32 %v508, %v589
  %v599 = vsel %vm382, %v591, 0.0
  %600 = vadd.xlane.f32.xlu0 %v599
  %v601 = vpop.xlane.xlu0 %600
  %v602 = vsel %vm382, %v592, 0.0
  %603 = vadd.xlane.f32.xlu0 %v602
  %v604 = vpop.xlane.xlu0 %603
  %v605 = vsel %vm382, %v593, 0.0
  %606 = vadd.xlane.f32.xlu0 %v605
  %v607 = vpop.xlane.xlu0 %606
  %v608 = vsel %vm382, %v594, 0.0
  %609 = vadd.xlane.f32.xlu0 %v608
  %v610 = vpop.xlane.xlu0 %609
  %v611 = vsel %vm382, %v595, 0.0
  %612 = vadd.xlane.f32.xlu0 %v611
  %v613 = vpop.xlane.xlu0 %612
  %v614 = vsel %vm382, %v596, 0.0
  %615 = vadd.xlane.f32.xlu0 %v614
  %v616 = vpop.xlane.xlu0 %615
  %v617 = vsel %vm382, %v597, 0.0
  %618 = vadd.xlane.f32.xlu0 %v617
  %v619 = vpop.xlane.xlu0 %618
  %v620 = vsel %vm382, %v598, 0.0
  %621 = vadd.xlane.f32.xlu0 %v620
  %v622 = vpop.xlane.xlu0 %621
  %v623 = vstv %s514
  %v624 = vadd.f32 %v601, %v623
  %v625 = vadd.f32 %v604, %v623
  %v626 = vadd.f32 %v607, %v623
  %v627 = vadd.f32 %v610, %v623
  %v628 = vadd.f32 %v613, %v623
  %v629 = vadd.f32 %v616, %v623
  %v630 = vadd.f32 %v619, %v623
  %v631 = vadd.f32 %v622, %v623
  %v632 = vxor.u32 %v624, 2147483648
  %v633 = vxor.u32 %v625, 2147483648
  %v634 = vxor.u32 %v626, 2147483648
  %v635 = vxor.u32 %v627, 2147483648
  %v636 = vxor.u32 %v628, 2147483648
  %v637 = vxor.u32 %v629, 2147483648
  %v638 = vxor.u32 %v630, 2147483648
  %v639 = vxor.u32 %v631, 2147483648
  %v640 = vmul.f32 %v632, 1.442695
  %v641 = vpow.pop %v640
  %v642 = vmul.f32 %v633, 1.442695
  %v643 = vpow.pop %v642
  %v644 = vmul.f32 %v634, 1.442695
  %v645 = vpow.pop %v644
  %v646 = vmul.f32 %v635, 1.442695
  %v647 = vpow.pop %v646
  %v648 = vmul.f32 %v636, 1.442695
  %v649 = vpow.pop %v648
  %v650 = vmul.f32 %v637, 1.442695
  %v651 = vpow.pop %v650
  %v652 = vmul.f32 %v638, 1.442695
  %v653 = vpow.pop %v652
  %v654 = vmul.f32 %v639, 1.442695
  %v655 = vpow.pop %v654
  %v656 = vadd.f32 %v641, 1.0
  %v657 = vadd.f32 %v643, 1.0
  %v658 = vadd.f32 %v645, 1.0
  %v659 = vadd.f32 %v647, 1.0
  %v660 = vadd.f32 %v649, 1.0
  %v661 = vadd.f32 %v651, 1.0
  %v662 = vadd.f32 %v653, 1.0
  %v663 = vadd.f32 %v655, 1.0
  %v664 = vrcp.pop %v656
  %v665 = vmul.f32 1.0, %v664
  %v666 = vrcp.pop %v657
  %v667 = vmul.f32 1.0, %v666
  %v668 = vrcp.pop %v658
  %v669 = vmul.f32 1.0, %v668
  %v670 = vrcp.pop %v659
  %v671 = vmul.f32 1.0, %v670
  %v672 = vrcp.pop %v660
  %v673 = vmul.f32 1.0, %v672
  %v674 = vrcp.pop %v661
  %v675 = vmul.f32 1.0, %v674
  %v676 = vrcp.pop %v662
  %v677 = vmul.f32 1.0, %v676
  %v678 = vrcp.pop %v663
  %v679 = vmul.f32 1.0, %v678
  %v682 = vlaneseq
  %v683 = vshrl.u32 %v682, 7
  %v684 = vsub.s32 0, %v683
  %v685 = vrot.slane %v582, %v684
  %v686 = vlaneseq
  %v687 = vshrl.u32 %v686, 7
  %v688 = vsub.s32 0, %v687
  %v689 = vrot.slane %v584, %v688
  %v692 = vadd.f32 %v685, %v665
  %v693 = vadd.f32 %v685, %v667
  %v694 = vadd.f32 %v685, %v669
  %v695 = vadd.f32 %v685, %v671
  %v696 = vadd.f32 %v689, %v673
  %v697 = vadd.f32 %v689, %v675
  %v698 = vadd.f32 %v689, %v677
  %v699 = vadd.f32 %v689, %v679
  %v700 = vmul.f32 %v501, %v692
  %v701 = vmul.f32 %v502, %v693
  %v702 = vmul.f32 %v503, %v694
  %v703 = vmul.f32 %v504, %v695
  %v704 = vmul.f32 %v505, %v696
  %v705 = vmul.f32 %v506, %v697
  %v706 = vmul.f32 %v507, %v698
  %v707 = vmul.f32 %v508, %v699
  %v708 = vpack.c.bf16 %v701, %v700
  %v709 = vpack.c.bf16 %v703, %v702
  %v710 = vpack.c.bf16 %v705, %v704
  %v711 = vpack.c.bf16 %v707, %v706
  %v716 = vunpack.c.l.b16 %v708
  %v717 = vunpack.c.h.b16 %v708
  %v718 = vunpack.c.l.b16 %v709
  %v719 = vunpack.c.h.b16 %v709
  %v720 = vunpack.c.l.b16 %v710
  %v721 = vunpack.c.h.b16 %v710
  %v722 = vunpack.c.l.b16 %v711
  %v723 = vunpack.c.h.b16 %v711
  %v724 = vpack.c.b16 %v716, %v716
  %v725 = vpack.c.b16 %v717, %v717
  %v726 = vpack.c.b16 %v718, %v718
  %v727 = vpack.c.b16 %v719, %v719
  %v728 = vpack.c.b16 %v720, %v720
  %v729 = vpack.c.b16 %v721, %v721
  %v730 = vpack.c.b16 %v722, %v722
  %v731 = vpack.c.b16 %v723, %v723
  %vm740 = vcmask 125952
  %741 = vst.msk [vmem:[%s11] sm:$0xf] %vm740, %v724
  %742 = vst.msk [vmem:[%s11 + $0x4] sm:$0xf] %vm740, %v725
  %743 = vst.msk [vmem:[%s11 + $0x8] sm:$0xf] %vm740, %v726
  %744 = vst.msk [vmem:[%s11 + $0xc] sm:$0xf] %vm740, %v727
  %745 = vst.msk [vmem:[%s11 + $0x10] sm:$0xf] %vm740, %v728
  %746 = vst.msk [vmem:[%s11 + $0x14] sm:$0xf] %vm740, %v729
  %747 = vst.msk [vmem:[%s11 + $0x18] sm:$0xf] %vm740, %v730
  %748 = vst.msk [vmem:[%s11 + $0x1c] sm:$0xf] %vm740, %v731
  // Predicated region
  $region46: #{_lambda_.3} parent=0 // pred_check
    _
  $region47: #{_lambda_.3} parent=0 // pred_check_branch
    %750 = sbr.rel (0) target = $region49
  $region48: #{_lambda_.3} parent=0 // pred_region
    _
  $region49: #{_lambda_.3} parent=0 // pred_fallthru
    _
  // Predicated region
  $region50: #{_lambda_.3} parent=0 // pred_check
    _
  $region51: #{_lambda_.3} parent=0 // pred_check_branch
    %752 = sbr.rel (0) target = $region53
  $region52: #{_lambda_.3} parent=0 // pred_region
    _
  $region53: #{_lambda_.3} parent=0 // pred_fallthru
    _

// kernel: _lambda_.2
$region0: #{_lambda_.2}
  #allocation0 [shape = 'u32[]', space=smem, size = 0x4, offset = 0x4, fixed_abs, tag = 'smem constant byte address 0x4 - core index']
  #allocation1 [shape = 'u32[144,128]{1,0:T(1,128)}', space=vmem, size = 0x12000, scoped, tag = 'internal scratch']
  #allocation2 [shape = 'f32[1,1]{1,0:T(1,128)S(6)}', space=smem, size = 0x200, scoped, tag = 'scoped memory for _lambda_.2']
  #allocation3 [shape = 'f32[1,1]{1,0:T(1,128)S(6)}', space=smem, size = 0x200, scoped, tag = 'scoped memory for _lambda_.2']
  %s0 = inlined_call_operand.vmem [shape: bf16[2,16,48], index: 0, kind: input, shape index: {}]
  %s1 = inlined_call_operand.vmem [shape: f32[3,48], index: 1, kind: input, shape index: {}]
  %s2 = inlined_call_operand.vmem [shape: f32[3,1], index: 2, kind: input, shape index: {}]
  %s3 = inlined_call_operand.vmem [shape: f32[3,48], index: 3, kind: input, shape index: {}]
  %s4 = inlined_call_operand.vmem [shape: f32[1,48], index: 4, kind: input, shape index: {}]
  %s5 = inlined_call_operand.vmem [shape: f32[1,48], index: 5, kind: input, shape index: {}]
  %s6 = inlined_call_operand.<no memory space> [shape: f32[1,1], index: 6, kind: input, shape index: {}]
  %s7 = inlined_call_operand.vmem [shape: bf16[144,32], index: 7, kind: input, shape index: {}]
  %s8 = inlined_call_operand.vmem [shape: f32[1,32], index: 8, kind: input, shape index: {}]
  %s9 = inlined_call_operand.vmem [shape: bf16[96,32], index: 9, kind: input, shape index: {}]
  %s10 = inlined_call_operand.vmem [shape: f32[1,32], index: 10, kind: input, shape index: {}]
  %s11 = inlined_call_operand.vmem [shape: f32[2,32], index: 11, kind: input, shape index: {}]
  %s12 = inlined_call_operand.vmem [shape: f32[2,1], index: 12, kind: input, shape index: {}]
  %s13 = inlined_call_operand.vmem [shape: f32[2,32], index: 13, kind: input, shape index: {}]
  %s14 = inlined_call_operand.vmem [shape: f32[1,32], index: 14, kind: input, shape index: {}]
  %s15 = inlined_call_operand.vmem [shape: f32[1,32], index: 15, kind: input, shape index: {}]
  %s16 = inlined_call_operand.<no memory space> [shape: f32[1,1], index: 16, kind: input, shape index: {}]
  %s17 = inlined_call_operand.vmem [shape: bf16[2,16,32], index: 17, kind: output, shape index: {}]
  %s18 = sld [smem:[#allocation0]]
  $region78: #{_lambda_.2} parent=0
    _
  %s20 = ssub.s32 1, %s18
  %s21 = scalar_select 0, %s20, %s18
  %22 = sst [smem:[#allocation2]] %s6
  %23 = sst [smem:[#allocation3]] %s16
  // Predicated region
  $region2: #{_lambda_.2} parent=0 // pred_check
    _
  $region3: #{_lambda_.2} parent=0 // pred_check_branch
    %25 = sbr.rel (0) target = $region5
  $region4: #{_lambda_.2} parent=0 // pred_region
    _
  $region5: #{_lambda_.2} parent=0 // pred_fallthru
    _
  // Predicated region
  $region6: #{_lambda_.2} parent=0 // pred_check
    _
  $region7: #{_lambda_.2} parent=0 // pred_check_branch
    %27 = sbr.rel (0) target = $region9
  $region8: #{_lambda_.2} parent=0 // pred_region
    _
  $region9: #{_lambda_.2} parent=0 // pred_fallthru
    _
  // Predicated region
  $region10: #{_lambda_.2} parent=0 // pred_check
    _
  $region11: #{_lambda_.2} parent=0 // pred_check_branch
    %29 = sbr.rel (0) target = $region13
  $region12: #{_lambda_.2} parent=0 // pred_region
    _
  $region13: #{_lambda_.2} parent=0 // pred_fallthru
    _
  // Predicated region
  $region14: #{_lambda_.2} parent=0 // pred_check
    _
  $region15: #{_lambda_.2} parent=0 // pred_check_branch
    %31 = sbr.rel (0) target = $region17
  $region16: #{_lambda_.2} parent=0 // pred_region
    _
  $region17: #{_lambda_.2} parent=0 // pred_fallthru
    _
  // Predicated region
  $region18: #{_lambda_.2} parent=0 // pred_check
    _
  $region19: #{_lambda_.2} parent=0 // pred_check_branch
    %33 = sbr.rel (0) target = $region21
  $region20: #{_lambda_.2} parent=0 // pred_region
    _
  $region21: #{_lambda_.2} parent=0 // pred_fallthru
    _
  // Predicated region
  $region22: #{_lambda_.2} parent=0 // pred_check
    _
  $region23: #{_lambda_.2} parent=0 // pred_check_branch
    %35 = sbr.rel (0) target = $region25
  $region24: #{_lambda_.2} parent=0 // pred_region
    _
  $region25: #{_lambda_.2} parent=0 // pred_fallthru
    _
  // Predicated region
  $region26: #{_lambda_.2} parent=0 // pred_check
    _
  $region27: #{_lambda_.2} parent=0 // pred_check_branch
    %37 = sbr.rel (0) target = $region29
  $region28: #{_lambda_.2} parent=0 // pred_region
    _
  $region29: #{_lambda_.2} parent=0 // pred_fallthru
    _
  // Predicated region
  $region30: #{_lambda_.2} parent=0 // pred_check
    _
  $region31: #{_lambda_.2} parent=0 // pred_check_branch
    %39 = sbr.rel (0) target = $region33
  $region32: #{_lambda_.2} parent=0 // pred_region
    _
  $region33: #{_lambda_.2} parent=0 // pred_fallthru
    _
  // Predicated region
  $region34: #{_lambda_.2} parent=0 // pred_check
    _
  $region35: #{_lambda_.2} parent=0 // pred_check_branch
    %41 = sbr.rel (0) target = $region37
  $region36: #{_lambda_.2} parent=0 // pred_region
    _
  $region37: #{_lambda_.2} parent=0 // pred_fallthru
    _
  // Predicated region
  $region38: #{_lambda_.2} parent=0 // pred_check
    _
  $region39: #{_lambda_.2} parent=0 // pred_check_branch
    %43 = sbr.rel (0) target = $region41
  $region40: #{_lambda_.2} parent=0 // pred_region
    _
  $region41: #{_lambda_.2} parent=0 // pred_fallthru
    _
  // Predicated region
  $region42: #{_lambda_.2} parent=0 // pred_check
    _
  $region43: #{_lambda_.2} parent=0 // pred_check_branch
    %45 = sbr.rel (0) target = $region45
  $region44: #{_lambda_.2} parent=0 // pred_region
    _
  $region45: #{_lambda_.2} parent=0 // pred_fallthru
    _
  // Predicated region
  $region46: #{_lambda_.2} parent=0 // pred_check
    _
  $region47: #{_lambda_.2} parent=0 // pred_check_branch
    %47 = sbr.rel (0) target = $region49
  $region48: #{_lambda_.2} parent=0 // pred_region
    _
  $region49: #{_lambda_.2} parent=0 // pred_fallthru
    _
  // Predicated region
  $region50: #{_lambda_.2} parent=0 // pred_check
    _
  $region51: #{_lambda_.2} parent=0 // pred_check_branch
    %49 = sbr.rel (0) target = $region53
  $region52: #{_lambda_.2} parent=0 // pred_region
    _
  $region53: #{_lambda_.2} parent=0 // pred_fallthru
    _
  // Predicated region
  $region54: #{_lambda_.2} parent=0 // pred_check
    _
  $region55: #{_lambda_.2} parent=0 // pred_check_branch
    %51 = sbr.rel (0) target = $region57
  $region56: #{_lambda_.2} parent=0 // pred_region
    _
  $region57: #{_lambda_.2} parent=0 // pred_fallthru
    _
  // Predicated region
  $region58: #{_lambda_.2} parent=0 // pred_check
    _
  $region59: #{_lambda_.2} parent=0 // pred_check_branch
    %53 = sbr.rel (0) target = $region61
  $region60: #{_lambda_.2} parent=0 // pred_region
    _
  $region61: #{_lambda_.2} parent=0 // pred_fallthru
    _
  // Predicated region
  $region62: #{_lambda_.2} parent=0 // pred_check
    _
  $region63: #{_lambda_.2} parent=0 // pred_check_branch
    %55 = sbr.rel (0) target = $region65
  $region64: #{_lambda_.2} parent=0 // pred_region
    _
  $region65: #{_lambda_.2} parent=0 // pred_fallthru
    _
  // Predicated region
  $region66: #{_lambda_.2} parent=0 // pred_check
    _
  $region67: #{_lambda_.2} parent=0 // pred_check_branch
    %57 = sbr.rel (0) target = $region69
  $region68: #{_lambda_.2} parent=0 // pred_region
    _
  $region69: #{_lambda_.2} parent=0 // pred_fallthru
    _
  %v59 = vld [vmem:[%s0] sm:$0xf]
  %v60 = vld [vmem:[%s0 + $0x4] sm:$0xf]
  %v61 = vld [vmem:[%s0 + $0x8] sm:$0xf]
  %v62 = vld [vmem:[%s0 + $0xc] sm:$0xf]
  %v63 = vld [vmem:[%s1] sm:$0x7]
  %v64 = vld [vmem:[%s2] sm:$0x7]
  %v65 = vld [vmem:[%s3] sm:$0x7]
  %v66 = vld [vmem:[%s4] sm:$0x1]
  %v67 = vld [vmem:[%s5] sm:$0x1]
  %s68 = sld [smem:[#allocation2]]
  %v69 = vunpack.c.l.bf16 %v59
  %v70 = vunpack.c.l.bf16 %v60
  %v71 = vunpack.c.l.bf16 %v61
  %v72 = vunpack.c.l.bf16 %v62
  %vm73 = vcmask 392192
  %v74 = vsel %vm73, %v69, 0.0
  %v75 = vsel %vm73, %v70, 0.0
  %v76 = vadd.f32 %v74, %v75
  %v77 = vrot.slane %v76, 4
  %v78 = vadd.f32 %v76, %v77
  %v79 = vrot.slane %v78, 2
  %v80 = vadd.f32 %v78, %v79
  %v81 = vrot.slane %v80, 1
  %v82 = vadd.f32 %v80, %v81
  %v83 = vsel %vm73, %v71, 0.0
  %v84 = vsel %vm73, %v72, 0.0
  %v85 = vadd.f32 %v83, %v84
  %v86 = vrot.slane %v85, 4
  %v87 = vadd.f32 %v85, %v86
  %v88 = vrot.slane %v87, 2
  %v89 = vadd.f32 %v87, %v88
  %v90 = vrot.slane %v89, 1
  %v91 = vadd.f32 %v89, %v90
  %v92 = vrcp.pop 16.0
  %v93 = vmul.f32 %v82, %v92
  %v94 = vmul.f32 %v91, %v92
  %v95 = vpack.c.bf16 %v93, %v93
  %v96 = vpack.c.bf16 %v94, %v94
  %v97 = vunpack.c.l.bf16 %v95
  %v98 = vunpack.c.l.bf16 %v96
  %v99 = vmul.f32 %v63, %v97
  %v100 = vmul.f32 %v63, %v98
  %vm101 = vcmask 387072
  %v102 = vsel %vm101, %v99, 0.0
  %103 = vadd.xlane.f32.xlu0 %v102
  %v104 = vpop.xlane.xlu0 %103
  %v105 = vsel %vm101, %v100, 0.0
  %106 = vadd.xlane.f32.xlu0 %v105
  %v107 = vpop.xlane.xlu0 %106
  %v108 = vadd.f32 %v104, %v64
  %v109 = vadd.f32 %v107, %v64
  %v110 = vmax.f32 %v108, 0.0
  %v111 = vmax.f32 %v109, 0.0
  %113 = vset.pattern.permute.xlu0 0
  %114 = vperm.xlu0 %113, %v110
  %v115 = vpop.permute.xlu0 %114
  %118 = vset.pattern.permute.xlu0 0
  %119 = vperm.xlu0 %118, %v111
  %v120 = vpop.permute.xlu0 %119
  %v122 = vmul.f32 %v65, %v115
  %v123 = vmul.f32 %v65, %v120
  %v124 = vsel %vm101, %v122, 0.0
  %v125 = vrot.slane %v124, 4
  %v126 = vadd.f32 %v124, %v125
  %v127 = vrot.slane %v126, 2
  %v128 = vadd.f32 %v126, %v127
  %v129 = vrot.slane %v128, 1
  %v130 = vadd.f32 %v128, %v129
  %v131 = vsel %vm101, %v123, 0.0
  %v132 = vrot.slane %v131, 4
  %v133 = vadd.f32 %v131, %v132
  %v134 = vrot.slane %v133, 2
  %v135 = vadd.f32 %v133, %v134
  %v136 = vrot.slane %v135, 1
  %v137 = vadd.f32 %v135, %v136
  %v138 = vadd.f32 %v130, %v66
  %v139 = vadd.f32 %v137, %v66
  %v140 = vxor.u32 %v138, 2147483648
  %v141 = vxor.u32 %v139, 2147483648
  %v142 = vmul.f32 %v140, 1.442695
  %v143 = vpow.pop %v142
  %v144 = vmul.f32 %v141, 1.442695
  %v145 = vpow.pop %v144
  %v146 = vadd.f32 %v143, 1.0
  %v147 = vadd.f32 %v145, 1.0
  %v148 = vrcp.pop %v146
  %v149 = vmul.f32 1.0, %v148
  %v150 = vrcp.pop %v147
  %v151 = vmul.f32 1.0, %v150
  %v152 = vpack.c.bf16 %v67, %v67
  %v154 = vpack.i.b16 %v152, %v152
  %v156 = vlaneseq
  %v157 = vshrl.u32 %v156, 7
  %v158 = vsub.s32 0, %v157
  %v159 = vrot.slane %v154, %v158
  %v161 = vunpack.c.l.b16 %v159
  %v162 = vpack.c.b16 %v161, %v161
  %v164 = vmul.bf16 %v59, %v162
  %v165 = vmul.bf16 %v60, %v162
  %v166 = vmul.bf16 %v61, %v162
  %v167 = vmul.bf16 %v62, %v162
  %v168 = vunpack.c.l.bf16 %v164
  %v169 = vunpack.c.l.bf16 %v165
  %v170 = vunpack.c.l.bf16 %v166
  %v171 = vunpack.c.l.bf16 %v167
  %v172 = vsel %vm73, %v168, 0.0
  %173 = vadd.xlane.f32.xlu0 %v172
  %v174 = vpop.xlane.xlu0 %173
  %v175 = vsel %vm73, %v169, 0.0
  %176 = vadd.xlane.f32.xlu0 %v175
  %v177 = vpop.xlane.xlu0 %176
  %v178 = vsel %vm73, %v170, 0.0
  %179 = vadd.xlane.f32.xlu0 %v178
  %v180 = vpop.xlane.xlu0 %179
  %v181 = vsel %vm73, %v171, 0.0
  %182 = vadd.xlane.f32.xlu0 %v181
  %v183 = vpop.xlane.xlu0 %182
  %v184 = vpack.c.bf16 %v177, %v174
  %v185 = vpack.c.bf16 %v183, %v180
  %v186 = vunpack.c.l.bf16 %v184
  %v187 = vunpack.c.h.bf16 %v184
  %v188 = vunpack.c.l.bf16 %v185
  %v189 = vunpack.c.h.bf16 %v185
  %v190 = vstv %s68
  %v191 = vadd.f32 %v186, %v190
  %v192 = vadd.f32 %v187, %v190
  %v193 = vadd.f32 %v188, %v190
  %v194 = vadd.f32 %v189, %v190
  %v195 = vxor.u32 %v191, 2147483648
  %v196 = vxor.u32 %v192, 2147483648
  %v197 = vxor.u32 %v193, 2147483648
  %v198 = vxor.u32 %v194, 2147483648
  %v199 = vmul.f32 %v195, 1.442695
  %v200 = vpow.pop %v199
  %v201 = vmul.f32 %v196, 1.442695
  %v202 = vpow.pop %v201
  %v203 = vmul.f32 %v197, 1.442695
  %v204 = vpow.pop %v203
  %v205 = vmul.f32 %v198, 1.442695
  %v206 = vpow.pop %v205
  %v207 = vadd.f32 %v200, 1.0
  %v208 = vadd.f32 %v202, 1.0
  %v209 = vadd.f32 %v204, 1.0
  %v210 = vadd.f32 %v206, 1.0
  %v211 = vrcp.pop %v207
  %v212 = vmul.f32 1.0, %v211
  %v213 = vrcp.pop %v208
  %v214 = vmul.f32 1.0, %v213
  %v215 = vrcp.pop %v209
  %v216 = vmul.f32 1.0, %v215
  %v217 = vrcp.pop %v210
  %v218 = vmul.f32 1.0, %v217
  %v219 = vlaneseq
  %v220 = vshrl.u32 %v219, 7
  %v221 = vsub.s32 0, %v220
  %v222 = vrot.slane %v149, %v221
  %v223 = vlaneseq
  %v224 = vshrl.u32 %v223, 7
  %v225 = vsub.s32 0, %v224
  %v226 = vrot.slane %v151, %v225
  %v227 = vadd.f32 %v222, %v212
  %v228 = vadd.f32 %v222, %v214
  %v229 = vadd.f32 %v226, %v216
  %v230 = vadd.f32 %v226, %v218
  %v231 = vpack.c.bf16 %v228, %v227
  %v232 = vpack.c.bf16 %v230, %v229
  %v235 = vunpack.c.l.b16 %v231
  %v236 = vunpack.c.h.b16 %v231
  %v237 = vunpack.c.l.b16 %v232
  %v238 = vunpack.c.h.b16 %v232
  %v239 = vpack.c.b16 %v235, %v235
  %v240 = vpack.c.b16 %v236, %v236
  %v241 = vpack.c.b16 %v237, %v237
  %v242 = vpack.c.b16 %v238, %v238
  %v247 = vmul.bf16 %v59, %v239
  %v248 = vmul.bf16 %v60, %v240
  %v249 = vmul.bf16 %v61, %v241
  %v250 = vmul.bf16 %v62, %v242
  %v251 = vld [vmem:[%s7] sm:$0xf]
  %v252 = vld [vmem:[%s7 + $0x4] sm:$0xf]
  %v253 = vld [vmem:[%s7 + $0x8] sm:$0xf]
  %v254 = vld [vmem:[%s7 + $0xc] sm:$0xf]
  %v255 = vld [vmem:[%s7 + $0x10] sm:$0xf]
  %v256 = vld [vmem:[%s7 + $0x14] sm:$0xf]
  %v257 = vld [vmem:[%s7 + $0x18] sm:$0xf]
  %v258 = vld [vmem:[%s7 + $0x1c] sm:$0xf]
  %v259 = vld [vmem:[%s7 + $0x20] sm:$0xf]
  %v260 = vld [vmem:[%s7 + $0x24] sm:$0xf]
  %v261 = vld [vmem:[%s7 + $0x28] sm:$0xf]
  %v262 = vld [vmem:[%s7 + $0x2c] sm:$0xf]
  %v263 = vld [vmem:[%s7 + $0x30] sm:$0xf]
  %v264 = vld [vmem:[%s7 + $0x34] sm:$0xf]
  %v265 = vld [vmem:[%s7 + $0x38] sm:$0xf]
  %v266 = vld [vmem:[%s7 + $0x3c] sm:$0xf]
  %v267 = vld [vmem:[%s7 + $0x40] sm:$0xf]
  %v268 = vld [vmem:[%s7 + $0x44] sm:$0xf]
  %v269 = vld [vmem:[%s8] sm:$0x1]
  %v274 = vunpack.c.l.b16 %v247
  %v275 = vunpack.c.l.b16 %v248
  %v276 = vunpack.c.l.b16 %v249
  %v277 = vunpack.c.l.b16 %v250
  %v278 = vpack.c.b16 %v275, %v274
  %v279 = vpack.c.b16 %v277, %v276
  %v281 = vshrl.u32 %v278, 16
  %v283 = vrot.slane %v281, 7
  %v284 = vshll.u32 %v278, 16
  %v286 = vor.u32 %v283, %v284
  %v288 = vshrl.u32 %v279, 16
  %v290 = vrot.slane %v288, 7
  %v291 = vshll.u32 %v279, 16
  %v293 = vor.u32 %v290, %v291
  %vm296 = vcmask 1040384
  %vm297 = vsmask.f32 256
  %vm298 = vmand %vm296, %vm297
  %v299 = vsel %vm298, 0, %v286
  %v300 = vsel %vm298, 0, %v293
  %v301 = vrot.slane %v284, 1
  %v302 = vor.u32 %v281, %v301
  %v303 = vrot.slane %v291, 1
  %v304 = vor.u32 %v288, %v303
  %vm307 = vcmask 1047552
  %vm308 = vsmask.f32 7424
  %vm309 = vmand %vm307, %vm308
  %v310 = vsel %vm309, %v302, 0
  %v311 = vsel %vm309, %v304, 0
  %312 = vrot.lane.b32.xlu0 %v278, 48
  %v313 = vpop.permute.xlu0 %312
  %314 = vrot.lane.b32.xlu0 %v279, 48
  %v315 = vpop.permute.xlu0 %314
  %318 = vrot.lane.b32.xlu0 %v310, 96
  %v319 = vpop.permute.xlu0 %318
  %320 = vrot.lane.b32.xlu0 %v311, 96
  %v321 = vpop.permute.xlu0 %320
  %v324 = vsel %vm73, %v299, %v313
  %v327 = vsel %vm73, %v300, %v315
  %vm328 = vcmask 785408
  %v330 = vsel %vm328, %v324, %v319
  %v333 = vsel %vm328, %v327, %v321
  %v336 = vlaneseq
  %v337 = vshrl.u32 %v336, 7
  %v338 = vsub.s32 0, %v337
  %v339 = vrot.slane %v269, %v338
  %v359 = vunpack.c.l.b16 %v251
  %v360 = vunpack.c.l.b16 %v252
  %v361 = vunpack.c.l.b16 %v253
  %v362 = vunpack.c.l.b16 %v254
  %v363 = vunpack.c.l.b16 %v255
  %v364 = vunpack.c.l.b16 %v256
  %v365 = vunpack.c.l.b16 %v257
  %v366 = vunpack.c.l.b16 %v258
  %v367 = vunpack.c.l.b16 %v259
  %v368 = vunpack.c.l.b16 %v260
  %v369 = vunpack.c.l.b16 %v261
  %v370 = vunpack.c.l.b16 %v262
  %v371 = vunpack.c.l.b16 %v263
  %v372 = vunpack.c.l.b16 %v264
  %v373 = vunpack.c.l.b16 %v265
  %v374 = vunpack.c.l.b16 %v266
  %v375 = vunpack.c.l.b16 %v267
  %v376 = vunpack.c.l.b16 %v268
  %v377 = vpack.c.b16 %v360, %v359
  %v378 = vpack.c.b16 %v362, %v361
  %v379 = vpack.c.b16 %v364, %v363
  %v380 = vpack.c.b16 %v366, %v365
  %v381 = vpack.c.b16 %v368, %v367
  %v382 = vpack.c.b16 %v370, %v369
  %v383 = vpack.c.b16 %v372, %v371
  %v384 = vpack.c.b16 %v374, %v373
  %v385 = vpack.c.b16 %v376, %v375
  %vm395 = vcmask 130048
  %v396 = vsel %vm395, %v319, 0
  %v398 = vsel %vm395, %v321, 0
  %400 = vmatprep.subr.bf16.mxu0 0
  %401 = vmatpush1.bf16.msra.mxu0 %v384
  %402 = vmatprep.subr.bf16.mxu0 0
  %403 = vmatpush1.bf16.msra.mxu0 %v383
  %404 = vmatprep.subr.bf16.mxu0 0
  %405 = vmatpush1.bf16.msra.mxu0 %v382
  %406 = vmatprep.subr.bf16.mxu0 0
  %407 = vmatpush1.bf16.msra.mxu0 %v381
  %408 = vmatprep.subr.bf16.mxu0 0
  %409 = vmatpush1.bf16.msra.mxu0 %v380
  %410 = vmatprep.subr.bf16.mxu0 0
  %411 = vmatpush1.bf16.msra.mxu0 %v379
  %412 = vmatprep.subr.bf16.mxu0 0
  %413 = vmatpush1.bf16.msra.mxu0 %v378
  %414 = vmatprep.subr.bf16.mxu0 0
  %415 = vmatpush1.bf16.msra.mxu0 %v377
  %416 = vmatprep.subr.bf16.mxu0 0
  %417 = vmatpush2.bf16.msra.mxu0 0
  %418 = vmatprep.subr.bf16.mxu0 0
  %419 = vmatpush2.bf16.msra.mxu0 0
  %420 = vmatprep.subr.bf16.mxu0 0
  %421 = vmatpush2.bf16.msra.mxu0 0
  %422 = vmatprep.subr.bf16.mxu0 0
  %423 = vmatpush2.bf16.msra.mxu0 0
  %424 = vmatprep.subr.bf16.mxu0 0
  %425 = vmatpush2.bf16.msra.mxu0 0
  %426 = vmatprep.subr.bf16.mxu0 0
  %427 = vmatpush2.bf16.msra.mxu0 0
  %428 = vmatprep.subr.bf16.mxu0 0
  %429 = vmatpush2.bf16.msra.mxu0 0
  %430 = vmatprep.subr.bf16.mxu0 0
  %431 = vmatpush2.bf16.msra.mxu0 %v385
  %432 = vmatprep.mubr.bf16.mxu0 %v396
  %433 = vmatmul.mubr.bf16.gmra.mxu0 %v330
  %v434 = vpop.f32.mrf.mxu0
  %v435 = vadd.f32 %v339, %v434
  %v436 = vpop.f32.mrf.mxu0
  %v437 = vpop.f32.mrf.mxu0
  %v438 = vadd.f32 %v339, %v437
  %v439 = vpop.f32.mrf.mxu0
  %440 = vmatprep.mubr.bf16.mxu0 %v398
  %441 = vmatmul.mubr.bf16.gmra.mxu0 %v333
  %v442 = vpop.f32.mrf.mxu0
  %v443 = vadd.f32 %v339, %v442
  %v444 = vpop.f32.mrf.mxu0
  %v445 = vpop.f32.mrf.mxu0
  %v446 = vadd.f32 %v339, %v445
  %v447 = vpop.f32.mrf.mxu0
  %448 = vdwg.mxu0
  %v449 = vmax.f32 %v435, 0.0
  %v450 = vmax.f32 %v438, 0.0
  %v451 = vmax.f32 %v443, 0.0
  %v452 = vmax.f32 %v446, 0.0
  %v453 = vpack.c.bf16 %v450, %v449
  %v454 = vpack.c.bf16 %v452, %v451
  %v455 = vld [vmem:[%s9] sm:$0xf]
  %v456 = vld [vmem:[%s9 + $0x4] sm:$0xf]
  %v457 = vld [vmem:[%s9 + $0x8] sm:$0xf]
  %v458 = vld [vmem:[%s9 + $0xc] sm:$0xf]
  %v459 = vld [vmem:[%s9 + $0x10] sm:$0xf]
  %v460 = vld [vmem:[%s9 + $0x14] sm:$0xf]
  %v461 = vld [vmem:[%s9 + $0x18] sm:$0xf]
  %v462 = vld [vmem:[%s9 + $0x1c] sm:$0xf]
  %v463 = vld [vmem:[%s9 + $0x20] sm:$0xf]
  %v464 = vld [vmem:[%s9 + $0x24] sm:$0xf]
  %v465 = vld [vmem:[%s9 + $0x28] sm:$0xf]
  %v466 = vld [vmem:[%s9 + $0x2c] sm:$0xf]
  %v467 = vld [vmem:[%s10] sm:$0x1]
  %v469 = vshrl.u32 %v453, 16
  %v471 = vrot.slane %v469, 7
  %v472 = vshll.u32 %v453, 16
  %v474 = vor.u32 %v471, %v472
  %v476 = vshrl.u32 %v454, 16
  %v478 = vrot.slane %v476, 7
  %v479 = vshll.u32 %v454, 16
  %v481 = vor.u32 %v478, %v479
  %v484 = vsel %vm298, 0, %v474
  %v485 = vsel %vm298, 0, %v481
  %v486 = vrot.slane %v472, 1
  %v487 = vor.u32 %v469, %v486
  %v488 = vrot.slane %v479, 1
  %v489 = vor.u32 %v476, %v488
  %v492 = vsel %vm309, %v487, 0
  %v493 = vsel %vm309, %v489, 0
  %496 = vrot.lane.b32.xlu0 %v453, 32
  %v497 = vpop.permute.xlu0 %496
  %498 = vrot.lane.b32.xlu0 %v454, 32
  %v499 = vpop.permute.xlu0 %498
  %502 = vrot.lane.b32.xlu0 %v492, 64
  %v503 = vpop.permute.xlu0 %502
  %504 = vrot.lane.b32.xlu0 %v493, 64
  %v505 = vpop.permute.xlu0 %504
  %vm506 = vcmask 261120
  %v509 = vsel %vm506, %v484, %v497
  %v512 = vsel %vm506, %v485, %v499
  %vm513 = vcmask 523264
  %v515 = vsel %vm513, %v509, %v503
  %v517 = vsel %vm513, %v512, %v505
  %v519 = vlaneseq
  %v520 = vshrl.u32 %v519, 7
  %v521 = vsub.s32 0, %v520
  %v522 = vrot.slane %v467, %v521
  %v536 = vunpack.c.l.b16 %v455
  %v537 = vunpack.c.l.b16 %v456
  %v538 = vunpack.c.l.b16 %v457
  %v539 = vunpack.c.l.b16 %v458
  %v540 = vunpack.c.l.b16 %v459
  %v541 = vunpack.c.l.b16 %v460
  %v542 = vunpack.c.l.b16 %v461
  %v543 = vunpack.c.l.b16 %v462
  %v544 = vunpack.c.l.b16 %v463
  %v545 = vunpack.c.l.b16 %v464
  %v546 = vunpack.c.l.b16 %v465
  %v547 = vunpack.c.l.b16 %v466
  %v548 = vpack.c.b16 %v537, %v536
  %v549 = vpack.c.b16 %v539, %v538
  %v550 = vpack.c.b16 %v541, %v540
  %v551 = vpack.c.b16 %v543, %v542
  %v552 = vpack.c.b16 %v545, %v544
  %v553 = vpack.c.b16 %v547, %v546
  %v560 = vsel %vm328, %v515, 0
  %v562 = vsel %vm328, %v517, 0
  %564 = vmatprep.subr.bf16.mxu0 0
  %565 = vmatpush1.bf16.msra.mxu0 0
  %566 = vmatprep.subr.bf16.mxu0 0
  %567 = vmatpush1.bf16.msra.mxu0 0
  %568 = vmatprep.subr.bf16.mxu0 0
  %569 = vmatpush1.bf16.msra.mxu0 %v553
  %570 = vmatprep.subr.bf16.mxu0 0
  %571 = vmatpush1.bf16.msra.mxu0 %v552
  %572 = vmatprep.subr.bf16.mxu0 0
  %573 = vmatpush1.bf16.msra.mxu0 %v551
  %574 = vmatprep.subr.bf16.mxu0 0
  %575 = vmatpush1.bf16.msra.mxu0 %v550
  %576 = vmatprep.subr.bf16.mxu0 0
  %577 = vmatpush1.bf16.msra.mxu0 %v549
  %578 = vmatprep.subr.bf16.mxu0 0
  %579 = vmatpush1.bf16.msra.mxu0 %v548
  %580 = vmatprep.subr.bf16.mxu0 0
  %581 = vmatpush2.bf16.msra.mxu0 0
  %582 = vmatprep.subr.bf16.mxu0 0
  %583 = vmatpush2.bf16.msra.mxu0 0
  %584 = vmatprep.subr.bf16.mxu0 0
  %585 = vmatpush2.bf16.msra.mxu0 0
  %586 = vmatprep.subr.bf16.mxu0 0
  %587 = vmatpush2.bf16.msra.mxu0 0
  %588 = vmatprep.subr.bf16.mxu0 0
  %589 = vmatpush2.bf16.msra.mxu0 0
  %590 = vmatprep.subr.bf16.mxu0 0
  %591 = vmatpush2.bf16.msra.mxu0 0
  %592 = vmatprep.subr.bf16.mxu0 0
  %593 = vmatpush2.bf16.msra.mxu0 0
  %594 = vmatprep.subr.bf16.mxu0 0
  %595 = vmatpush2.bf16.msra.mxu0 0
  %596 = vmatprep.mubr.bf16.mxu0 0
  %597 = vmatmul.mubr.bf16.gmra.mxu0 %v560
  %v598 = vpop.f32.mrf.mxu0
  %v599 = vadd.f32 %v522, %v598
  %v600 = vpop.f32.mrf.mxu0
  %v601 = vpop.f32.mrf.mxu0
  %v602 = vadd.f32 %v522, %v601
  %v603 = vpop.f32.mrf.mxu0
  %604 = vmatprep.mubr.bf16.mxu0 0
  %605 = vmatmul.mubr.bf16.gmra.mxu0 %v562
  %v606 = vpop.f32.mrf.mxu0
  %v607 = vadd.f32 %v522, %v606
  %v608 = vpop.f32.mrf.mxu0
  %v609 = vpop.f32.mrf.mxu0
  %v610 = vadd.f32 %v522, %v609
  %v611 = vpop.f32.mrf.mxu0
  %612 = vdwg.mxu0
  %v613 = vmax.f32 %v599, 0.0
  %v614 = vmax.f32 %v602, 0.0
  %v615 = vmax.f32 %v607, 0.0
  %v616 = vmax.f32 %v610, 0.0
  %v617 = vld [vmem:[%s11] sm:$0x3]
  %v618 = vld [vmem:[%s12] sm:$0x3]
  %v619 = vld [vmem:[%s13] sm:$0x3]
  %v620 = vld [vmem:[%s14] sm:$0x1]
  %v621 = vld [vmem:[%s15] sm:$0x1]
  %s622 = sld [smem:[#allocation3]]
  %v623 = vsel %vm506, %v613, 0.0
  %v624 = vsel %vm506, %v614, 0.0
  %v625 = vadd.f32 %v623, %v624
  %v626 = vrot.slane %v625, 4
  %v627 = vadd.f32 %v625, %v626
  %v628 = vrot.slane %v627, 2
  %v629 = vadd.f32 %v627, %v628
  %v630 = vrot.slane %v629, 1
  %v631 = vadd.f32 %v629, %v630
  %v632 = vsel %vm506, %v615, 0.0
  %v633 = vsel %vm506, %v616, 0.0
  %v634 = vadd.f32 %v632, %v633
  %v635 = vrot.slane %v634, 4
  %v636 = vadd.f32 %v634, %v635
  %v637 = vrot.slane %v636, 2
  %v638 = vadd.f32 %v636, %v637
  %v639 = vrot.slane %v638, 1
  %v640 = vadd.f32 %v638, %v639
  %v641 = vmul.f32 %v631, %v92
  %v642 = vmul.f32 %v640, %v92
  %v643 = vmul.f32 %v617, %v641
  %v644 = vmul.f32 %v617, %v642
  %vm645 = vcmask 254976
  %v646 = vsel %vm645, %v643, 0.0
  %647 = vadd.xlane.f32.xlu0 %v646
  %v648 = vpop.xlane.xlu0 %647
  %v649 = vsel %vm645, %v644, 0.0
  %650 = vadd.xlane.f32.xlu0 %v649
  %v651 = vpop.xlane.xlu0 %650
  %v652 = vadd.f32 %v648, %v618
  %v653 = vadd.f32 %v651, %v618
  %v654 = vmax.f32 %v652, 0.0
  %v655 = vmax.f32 %v653, 0.0
  %657 = vset.pattern.permute.xlu0 0
  %658 = vperm.xlu0 %657, %v654
  %v659 = vpop.permute.xlu0 %658
  %662 = vset.pattern.permute.xlu0 0
  %663 = vperm.xlu0 %662, %v655
  %v664 = vpop.permute.xlu0 %663
  %v666 = vmul.f32 %v619, %v659
  %v667 = vmul.f32 %v619, %v664
  %v668 = vsel %vm645, %v666, 0.0
  %v669 = vrot.slane %v668, 4
  %v670 = vadd.f32 %v668, %v669
  %v671 = vrot.slane %v670, 2
  %v672 = vadd.f32 %v670, %v671
  %v673 = vrot.slane %v672, 1
  %v674 = vadd.f32 %v672, %v673
  %v675 = vsel %vm645, %v667, 0.0
  %v676 = vrot.slane %v675, 4
  %v677 = vadd.f32 %v675, %v676
  %v678 = vrot.slane %v677, 2
  %v679 = vadd.f32 %v677, %v678
  %v680 = vrot.slane %v679, 1
  %v681 = vadd.f32 %v679, %v680
  %v682 = vadd.f32 %v674, %v620
  %v683 = vadd.f32 %v681, %v620
  %v684 = vxor.u32 %v682, 2147483648
  %v685 = vxor.u32 %v683, 2147483648
  %v686 = vmul.f32 %v684, 1.442695
  %v687 = vpow.pop %v686
  %v688 = vmul.f32 %v685, 1.442695
  %v689 = vpow.pop %v688
  %v690 = vadd.f32 %v687, 1.0
  %v691 = vadd.f32 %v689, 1.0
  %v692 = vrcp.pop %v690
  %v693 = vmul.f32 1.0, %v692
  %v694 = vrcp.pop %v691
  %v695 = vmul.f32 1.0, %v694
  %v697 = vlaneseq
  %v698 = vshrl.u32 %v697, 7
  %v699 = vsub.s32 0, %v698
  %v700 = vrot.slane %v621, %v699
  %v702 = vmul.f32 %v613, %v700
  %v703 = vmul.f32 %v614, %v700
  %v704 = vmul.f32 %v615, %v700
  %v705 = vmul.f32 %v616, %v700
  %v706 = vsel %vm506, %v702, 0.0
  %707 = vadd.xlane.f32.xlu0 %v706
  %v708 = vpop.xlane.xlu0 %707
  %v709 = vsel %vm506, %v703, 0.0
  %710 = vadd.xlane.f32.xlu0 %v709
  %v711 = vpop.xlane.xlu0 %710
  %v712 = vsel %vm506, %v704, 0.0
  %713 = vadd.xlane.f32.xlu0 %v712
  %v714 = vpop.xlane.xlu0 %713
  %v715 = vsel %vm506, %v705, 0.0
  %716 = vadd.xlane.f32.xlu0 %v715
  %v717 = vpop.xlane.xlu0 %716
  %v718 = vstv %s622
  %v719 = vadd.f32 %v708, %v718
  %v720 = vadd.f32 %v711, %v718
  %v721 = vadd.f32 %v714, %v718
  %v722 = vadd.f32 %v717, %v718
  %v723 = vxor.u32 %v719, 2147483648
  %v724 = vxor.u32 %v720, 2147483648
  %v725 = vxor.u32 %v721, 2147483648
  %v726 = vxor.u32 %v722, 2147483648
  %v727 = vmul.f32 %v723, 1.442695
  %v728 = vpow.pop %v727
  %v729 = vmul.f32 %v724, 1.442695
  %v730 = vpow.pop %v729
  %v731 = vmul.f32 %v725, 1.442695
  %v732 = vpow.pop %v731
  %v733 = vmul.f32 %v726, 1.442695
  %v734 = vpow.pop %v733
  %v735 = vadd.f32 %v728, 1.0
  %v736 = vadd.f32 %v730, 1.0
  %v737 = vadd.f32 %v732, 1.0
  %v738 = vadd.f32 %v734, 1.0
  %v739 = vrcp.pop %v735
  %v740 = vmul.f32 1.0, %v739
  %v741 = vrcp.pop %v736
  %v742 = vmul.f32 1.0, %v741
  %v743 = vrcp.pop %v737
  %v744 = vmul.f32 1.0, %v743
  %v745 = vrcp.pop %v738
  %v746 = vmul.f32 1.0, %v745
  %v747 = vlaneseq
  %v748 = vshrl.u32 %v747, 7
  %v749 = vsub.s32 0, %v748
  %v750 = vrot.slane %v693, %v749
  %v751 = vlaneseq
  %v752 = vshrl.u32 %v751, 7
  %v753 = vsub.s32 0, %v752
  %v754 = vrot.slane %v695, %v753
  %v755 = vadd.f32 %v750, %v740
  %v756 = vadd.f32 %v750, %v742
  %v757 = vadd.f32 %v754, %v744
  %v758 = vadd.f32 %v754, %v746
  %v759 = vmul.f32 %v613, %v755
  %v760 = vmul.f32 %v614, %v756
  %v761 = vmul.f32 %v615, %v757
  %v762 = vmul.f32 %v616, %v758
  %v763 = vpack.c.bf16 %v760, %v759
  %v764 = vpack.c.bf16 %v762, %v761
  %v767 = vunpack.c.l.b16 %v763
  %v768 = vunpack.c.h.b16 %v763
  %v769 = vunpack.c.l.b16 %v764
  %v770 = vunpack.c.h.b16 %v764
  %v771 = vpack.c.b16 %v767, %v767
  %v772 = vpack.c.b16 %v768, %v768
  %v773 = vpack.c.b16 %v769, %v769
  %v774 = vpack.c.b16 %v770, %v770
  %vm779 = vcmask 257024
  %780 = vst.msk [vmem:[%s17] sm:$0xf] %vm779, %v771
  %781 = vst.msk [vmem:[%s17 + $0x4] sm:$0xf] %vm779, %v772
  %782 = vst.msk [vmem:[%s17 + $0x8] sm:$0xf] %vm779, %v773
  %783 = vst.msk [vmem:[%s17 + $0xc] sm:$0xf] %vm779, %v774
  // Predicated region
  $region70: #{_lambda_.2} parent=0 // pred_check
    _
  $region71: #{_lambda_.2} parent=0 // pred_check_branch
    %785 = sbr.rel (0) target = $region73
  $region72: #{_lambda_.2} parent=0 // pred_region
    _
  $region73: #{_lambda_.2} parent=0 // pred_fallthru
    _
  // Predicated region
  $region74: #{_lambda_.2} parent=0 // pred_check
    _
  $region75: #{_lambda_.2} parent=0 // pred_check_branch
    %787 = sbr.rel (0) target = $region77
  $region76: #{_lambda_.2} parent=0 // pred_region
    _
  $region77: #{_lambda_.2} parent=0 // pred_fallthru
    _

</llo_original>
